<compile_context>
chip_gen: v7x
topology: tpu7x:2x2x1
jax: 0.10.0
libtpu: 0.0.40
codegen_flags: <defaults>
</compile_context>

<pallas_src>
import functools

import numpy as np
import jax
import jax.numpy as jnp
from jax.experimental import pallas as pl
from jax.experimental.pallas import tpu as pltpu

PI = np.pi
_TINY = 1e-30  # clamp for |real|^2+|imag|^2 (atan2(0,0) was well-defined; keep it finite)


def _round_up(n, m):
    return ((n + m - 1) // m) * m


# ----------------------------------------------------------------------------
# Kernel
# ----------------------------------------------------------------------------
def iqnn_kernel(x_ref,
                cte_ref, ste_ref, cle_ref, sle_ref, cce_ref, sce_ref,
                ctd_ref, std_ref, cld_ref, sld_ref, ccd_ref, scd_ref,
                o_ref, *, approx):
    """One batch tile: encoder + decoder + sin^2, fully fused.

    No atan2 / sin / cos chains on intermediates, no concat/cast materializations:
    4 accumulating MXU dots per layer with f32 accumulation.
    """
    f32 = jnp.float32
    wdt = cte_ref.dtype  # MXU operand dtype (bf16 fast path / f32 exact path)

    # inputs = pi/2 * inputs  (the only batch-dependent transcendental work)
    x = x_ref[...].astype(f32) * (PI / 2.0)
    # TODO(synk): on v6e/v7x (bf16 EUP/VPU) the cos/sin below could run in bf16; kept f32
    # so the same kernel is exact-path-capable and safe on v5e.
    cos_x = jnp.cos(x).astype(wdt)
    sin_x = jnp.sin(x).astype(wdt)

    # ---- encoder: 4 accumulating dots -> real / imag (f32 accumulators) ----
    cte = cte_ref[...]
    ste = ste_ref[...]
    real_e = (jnp.dot(cos_x, cte, preferred_element_type=f32)
              - jnp.dot(sin_x, ste, preferred_element_type=f32)
              + cle_ref[...])
    imag_e = (jnp.dot(sin_x, cte, preferred_element_type=f32)
              + jnp.dot(cos_x, ste, preferred_element_type=f32)
              + sle_ref[...])

    nsq_e = jnp.maximum(real_e * real_e + imag_e * imag_e, _TINY)
    if approx:
        inv_n = jax.lax.rsqrt(nsq_e)
    else:
        inv_n = 1.0 / jnp.sqrt(nsq_e)

    cce = cce_ref[...]
    sce = sce_ref[...]
    # comp = c_e - atan2(imag_e, real_e); only cos/sin of it are needed downstream.
    cos_h = ((cce * real_e + sce * imag_e) * inv_n).astype(wdt)
    sin_h = ((sce * real_e - cce * imag_e) * inv_n).astype(wdt)

    # ---- decoder: 4 accumulating dots -> real / imag ----
    ctd = ctd_ref[...]
    std = std_ref[...]
    real_d = (jnp.dot(cos_h, ctd, preferred_element_type=f32)
              - jnp.dot(sin_h, std, preferred_element_type=f32)
              + cld_ref[...])
    imag_d = (jnp.dot(sin_h, ctd, preferred_element_type=f32)
              + jnp.dot(cos_h, std, preferred_element_type=f32)
              + sld_ref[...])

    # output = sin^2(recon), directly from real/imag (no atan2, no sin).
    num = scd_ref[...] * real_d - ccd_ref[...] * imag_d
    den = jnp.maximum(real_d * real_d + imag_d * imag_d, _TINY)
    if approx:
        out = (num * num) * pl.reciprocal(den, approx=True)
    else:
        out = (num * num) / den
    o_ref[...] = out.astype(o_ref.dtype)


# ----------------------------------------------------------------------------
# Wrapper-side precompute (batch independent; build ONCE and reuse across calls)
# ----------------------------------------------------------------------------
def precompute_tables(params, mxu_dtype=jnp.bfloat16):
    """cos/sin weight tables, padded to lane-dense (multiples of 128) shapes.

    `mxu_dtype` controls the MXU operand dtype (bf16 default; jnp.float32 for the exact
    path; on v7x jnp.float8_e4m3fn is a further option since all entries are in [-1,1]).
    """
    theta_e, lam_e, delta_e = params["theta_e"], params["lam_e"], params["delta_e"]
    theta_d, lam_d, delta_d = params["theta_d"], params["lam_d"], params["delta_d"]
    F, H = theta_e.shape

    fin_p = _round_up(F, 128)   # padded input-feature dim (encoder contraction)
    hp = _round_up(H, 128)      # padded hidden dim
    fp = _round_up(F, 128)      # padded output dim (lane-dense stores)

    def pad2(a, r, c):
        return jnp.pad(a, ((0, r - a.shape[0]), (0, c - a.shape[1])))

    def pad1(a, n):
        return jnp.pad(a, ((0, n - a.shape[0]),))

    # Encoder tables (separate cos/sin -- no duplicated block matrix).
    cos_te = pad2(jnp.cos(theta_e), fin_p, hp).astype(mxu_dtype)
    sin_te = pad2(jnp.sin(theta_e), fin_p, hp).astype(mxu_dtype)
    lam_e_p = pad1(lam_e, hp)
    cos_le = jnp.cos(lam_e_p)[None, :].astype(jnp.float32)
    sin_le = jnp.sin(lam_e_p)[None, :].astype(jnp.float32)
    c_e = (PI / 2.0) * jax.nn.sigmoid(pad1(delta_e, hp))
    cos_ce = jnp.cos(c_e)[None, :].astype(jnp.float32)
    sin_ce = jnp.sin(c_e)[None, :].astype(jnp.float32)

    # Decoder tables.
    cos_td = pad2(jnp.cos(theta_d), hp, fp).astype(mxu_dtype)
    sin_td = pad2(jnp.sin(theta_d), hp, fp).astype(mxu_dtype)
    lam_d_p = pad1(lam_d, fp)
    cos_ld = jnp.cos(lam_d_p)[None, :].astype(jnp.float32)
    sin_ld = jnp.sin(lam_d_p)[None, :].astype(jnp.float32)
    c_d = (PI / 2.0) * jax.nn.sigmoid(pad1(delta_d, fp))
    cos_cd = jnp.cos(c_d)[None, :].astype(jnp.float32)
    sin_cd = jnp.sin(c_d)[None, :].astype(jnp.float32)

    return dict(cos_te=cos_te, sin_te=sin_te, cos_le=cos_le, sin_le=sin_le,
                cos_ce=cos_ce, sin_ce=sin_ce,
                cos_td=cos_td, sin_td=sin_td, cos_ld=cos_ld, sin_ld=sin_ld,
                cos_cd=cos_cd, sin_cd=sin_cd,
                F=F, H=H, fin_p=fin_p, hp=hp, fp=fp)


# ----------------------------------------------------------------------------
# VMEM budgeting / tile selection
# ----------------------------------------------------------------------------
def _vmem_capacity_bytes():
    try:
        return int(pltpu.get_tpu_info().vmem_capacity_bytes)
    except Exception:
        return 128 * 1024 * 1024  # conservative v5e/v6e value


def _pick_batch_tile(B, fin_p, hp, fp, w_bytes, x_bytes, out_bytes, budget):
    """Largest batch tile (multiple of 8) whose weights + IO buffers + intermediates fit."""
    cap = _round_up(B, 8)
    if B > 8:
        # Keep >= 2 grid steps so v7x's two TensorCores both get work under "parallel".
        cap = min(cap, _round_up(-(-B // 2), 8))
    cands = [c for c in (1024, 768, 512, 384, 256, 192, 128, 96, 64, 48, 32, 24, 16, 8)
             if c <= cap]
    if cap not in cands:
        cands = [cap] + cands

    weights = (2 * fin_p * hp + 2 * hp * fp) * w_bytes + (4 * hp + 4 * fp) * 4
    for tb in cands:
        io = 2 * tb * (fin_p * x_bytes + fp * out_bytes)       # double-buffered x/out tiles
        inter = tb * (4 * fin_p + 8 * hp + 8 * fp) * 4         # f32 in-kernel intermediates
        if weights + io + inter <= budget:
            return tb
    return 8


# ----------------------------------------------------------------------------
# pallas_call builder + forward
# ----------------------------------------------------------------------------
def _build_call(t, tb, bp, out_dtype, approx, vmem_limit, single_buffer_weights):
    fin_p, hp, fp = t["fin_p"], t["hp"], t["fp"]
    x_map = lambda i: (i, 0)
    const = lambda i: (0, 0)   # weight tables: same block every step -> resident in VMEM

    def wspec(shape):
        if single_buffer_weights and hasattr(pl, "Buffered"):
            # Constant blocks never need the second pipeline buffer.
            return pl.BlockSpec(shape, const, pipeline_mode=pl.Buffered(1))
        return pl.BlockSpec(shape, const)

    kernel = functools.partial(iqnn_kernel, approx=approx)
    return pl.pallas_call(
        kernel,
        out_shape=jax.ShapeDtypeStruct((bp, fp), out_dtype),
        grid_spec=pltpu.PrefetchScalarGridSpec(
            num_scalar_prefetch=0,
            grid=(bp // tb,),
            in_specs=[
                pl.BlockSpec((tb, fin_p), x_map),      # x tile
                wspec((fin_p, hp)), wspec((fin_p, hp)),            # cos/sin(theta_e)
                wspec((1, hp)), wspec((1, hp)),                    # cos/sin(lam_e)
                wspec((1, hp)), wspec((1, hp)),                    # cos/sin(c_e)
                wspec((hp, fp)), wspec((hp, fp)),                  # cos/sin(theta_d)
                wspec((1, fp)), wspec((1, fp)),                    # cos/sin(lam_d)
                wspec((1, fp)), wspec((1, fp)),                    # cos/sin(c_d)
            ],
            out_specs=pl.BlockSpec((tb, fp), x_map),
        ),
        compiler_params=pltpu.CompilerParams(
            dimension_semantics=("parallel",),         # megacore / v7x 2-TC sharding
            vmem_limit_bytes=vmem_limit,
        ),
    )


def iqnn_forward_with_tables(x, t, *, approx=True, batch_tile=None,
                             out_dtype=jnp.float32):
    B, F = x.shape
    assert F == t["F"], "feature mismatch between x and weight tables"
    fin_p, hp, fp = t["fin_p"], t["hp"], t["fp"]

    w_bytes = jnp.dtype(t["cos_te"].dtype).itemsize
    x_bytes = jnp.dtype(x.dtype).itemsize
    out_bytes = jnp.dtype(out_dtype).itemsize

    vmem_cap = _vmem_capacity_bytes()
    vmem_limit = int(vmem_cap * 0.8)               # headroom for compiler scratch

    tb = batch_tile if batch_tile is not None else _pick_batch_tile(
        B, fin_p, hp, fp, w_bytes, x_bytes, out_bytes, int(vmem_limit * 0.75))
    bp = _round_up(B, tb)

    # Keep x in its native dtype; pad only if shapes actually require it.
    if bp != B or fin_p != F:
        x_in = jnp.pad(x, ((0, bp - B), (0, fin_p - F)))
    else:
        x_in = x

    args = (x_in,
            t["cos_te"], t["sin_te"], t["cos_le"], t["sin_le"], t["cos_ce"], t["sin_ce"],
            t["cos_td"], t["sin_td"], t["cos_ld"], t["sin_ld"], t["cos_cd"], t["sin_cd"])

    try:
        out = _build_call(t, tb, bp, out_dtype, approx, vmem_limit,
                          single_buffer_weights=True)(*args)
    except Exception:
        # This JAX build rejected pipeline_mode=pl.Buffered(1); default buffering is
        # still correct (just uses a second, wasted VMEM buffer for the constant tables).
        out = _build_call(t, tb, bp, out_dtype, approx, vmem_limit,
                          single_buffer_weights=False)(*args)

    if bp != B or fp != F:
        out = out[:B, :F]
    return out


def iqnn_forward(x, params, *, mxu_dtype=jnp.bfloat16, approx=True,
                 batch_tile=None, out_dtype=jnp.float32, tables=None):
    """x: [B, input_size].  For repeated inference, build `tables` once with
    precompute_tables(params, mxu_dtype) and pass it in to avoid re-running the
    weight-side trig / padding on every call."""
    if tables is None:
        tables = precompute_tables(params, mxu_dtype=mxu_dtype)
    return iqnn_forward_with_tables(x, tables, approx=approx,
                                    batch_tile=batch_tile, out_dtype=out_dtype)


# ----------------------------------------------------------------------------
# Init + pure-JAX reference (original PyTorch semantics)
# ----------------------------------------------------------------------------
def init_params(key, input_size, hidden_size):
    """Matches nn.init.uniform_(-pi, pi) for every parameter."""
    ks = jax.random.split(key, 6)
    u = lambda k, shape: jax.random.uniform(k, shape, dtype=jnp.float32,
                                            minval=-PI, maxval=PI)
    return {
        "theta_e": u(ks[0], (input_size, hidden_size)),
        "lam_e":   u(ks[1], (hidden_size,)),
        "delta_e": u(ks[2], (hidden_size,)),
        "theta_d": u(ks[3], (hidden_size, input_size)),
        "lam_d":   u(ks[4], (input_size,)),
        "delta_d": u(ks[5], (input_size,)),
    }


def iqnn_reference(x, params):
    prec = jax.lax.Precision.HIGHEST

    def iql(x, theta, lam, delta):
        real = (jnp.matmul(jnp.cos(x), jnp.cos(theta), precision=prec)
                - jnp.matmul(jnp.sin(x), jnp.sin(theta), precision=prec) + jnp.cos(lam))
        imag = (jnp.matmul(jnp.sin(x), jnp.cos(theta), precision=prec)
                + jnp.matmul(jnp.cos(x), jnp.sin(theta), precision=prec) + jnp.sin(lam))
        return (PI / 2.0) * jax.nn.sigmoid(delta) - jnp.arctan2(imag, real)

    x = (PI / 2.0) * x
    comp = iql(x, params["theta_e"], params["lam_e"], params["delta_e"])
    recon = iql(comp, params["theta_d"], params["lam_d"], params["delta_d"])
    return jnp.sin(recon) ** 2


if __name__ == "__main__":
    key = jax.random.PRNGKey(0)
    k_x, k_p = jax.random.split(key)

    batch, input_size, hidden_size = 8, 32, 64
    x = jax.random.normal(k_x, (batch, input_size), dtype=jnp.float32)
    params = init_params(k_p, input_size, hidden_size)

    ref = np.asarray(jax.block_until_ready(iqnn_reference(x, params)))

    # Exact path: f32 MXU operands, exact sqrt/divide -- validates the atan2-free
    # reformulation, the split cos/sin weight tables and the padded layout.
    tables_f32 = precompute_tables(params, mxu_dtype=jnp.float32)
    out_f32 = np.asarray(jax.block_until_ready(
        iqnn_forward_with_tables(x, tables_f32, approx=False)))
    np.testing.assert_allclose(out_f32, ref, rtol=1e-3, atol=1e-3)

    # Fast path (production default): bf16 MXU operands + EUP-approx rsqrt/reciprocal.
    # Tables built once and reusable across forward calls.
    tables_bf16 = precompute_tables(params, mxu_dtype=jnp.bfloat16)
    out_fast = np.asarray(jax.block_until_ready(
        iqnn_forward_with_tables(x, tables_bf16, approx=True)))
    assert np.all(np.isfinite(out_fast))
    assert np.mean(np.abs(out_fast - ref)) < 2e-2

    print("KERNEL_OK")
</pallas_src>

<mosaic_0001>
module attributes {stable_mosaic.version = 11 : i64} {
  func.func @iqnn_kernel(%arg0: i32, %arg1: memref<8x128xf32, #tpu.memory_space<vmem>>, %arg2: memref<128x128xf32, #tpu.memory_space<vmem>>, %arg3: memref<128x128xf32, #tpu.memory_space<vmem>>, %arg4: memref<1x128xf32, #tpu.memory_space<vmem>>, %arg5: memref<1x128xf32, #tpu.memory_space<vmem>>, %arg6: memref<1x128xf32, #tpu.memory_space<vmem>>, %arg7: memref<1x128xf32, #tpu.memory_space<vmem>>, %arg8: memref<128x128xf32, #tpu.memory_space<vmem>>, %arg9: memref<128x128xf32, #tpu.memory_space<vmem>>, %arg10: memref<1x128xf32, #tpu.memory_space<vmem>>, %arg11: memref<1x128xf32, #tpu.memory_space<vmem>>, %arg12: memref<1x128xf32, #tpu.memory_space<vmem>>, %arg13: memref<1x128xf32, #tpu.memory_space<vmem>>, %arg14: memref<8x128xf32, #tpu.memory_space<vmem>>) attributes {dimension_semantics = [#tpu.dimension_semantics<parallel>], iteration_bounds = array<i64: 1>, scalar_prefetch = 0 : i64, scratch_operands = 0 : i64, tpu.core_type = #tpu.core_type<tc>, window_params = [{transform_indices = @transform_0, window_bounds = array<i64: 8, 128>}, {pipeline_mode = #tpu.pipeline_mode<synchronous>, transform_indices = @transform_1, window_bounds = array<i64: 128, 128>}, {pipeline_mode = #tpu.pipeline_mode<synchronous>, transform_indices = @transform_2, window_bounds = array<i64: 128, 128>}, {pipeline_mode = #tpu.pipeline_mode<synchronous>, transform_indices = @transform_3, window_bounds = array<i64: 1, 128>}, {pipeline_mode = #tpu.pipeline_mode<synchronous>, transform_indices = @transform_4, window_bounds = array<i64: 1, 128>}, {pipeline_mode = #tpu.pipeline_mode<synchronous>, transform_indices = @transform_5, window_bounds = array<i64: 1, 128>}, {pipeline_mode = #tpu.pipeline_mode<synchronous>, transform_indices = @transform_6, window_bounds = array<i64: 1, 128>}, {pipeline_mode = #tpu.pipeline_mode<synchronous>, transform_indices = @transform_7, window_bounds = array<i64: 128, 128>}, {pipeline_mode = #tpu.pipeline_mode<synchronous>, transform_indices = @transform_8, window_bounds = array<i64: 128, 128>}, {pipeline_mode = #tpu.pipeline_mode<synchronous>, transform_indices = @transform_9, window_bounds = array<i64: 1, 128>}, {pipeline_mode = #tpu.pipeline_mode<synchronous>, transform_indices = @transform_10, window_bounds = array<i64: 1, 128>}, {pipeline_mode = #tpu.pipeline_mode<synchronous>, transform_indices = @transform_11, window_bounds = array<i64: 1, 128>}, {pipeline_mode = #tpu.pipeline_mode<synchronous>, transform_indices = @transform_12, window_bounds = array<i64: 1, 128>}, {transform_indices = @transform_13, window_bounds = array<i64: 8, 128>}]} {
    %c0 = arith.constant 0 : index
    %c0_0 = arith.constant 0 : index
    %0 = vector.load %arg1[%c0, %c0_0] : memref<8x128xf32, #tpu.memory_space<vmem>>, vector<8x128xf32>
    %cst = arith.constant 1.57079637 : f32
    %1 = vector.broadcast %cst : f32 to vector<8x128xf32>
    %2 = arith.mulf %0, %1 : vector<8x128xf32>
    %3 = math.cos %2 : vector<8x128xf32>
    %4 = math.sin %2 : vector<8x128xf32>
    %c0_1 = arith.constant 0 : index
    %c0_2 = arith.constant 0 : index
    %5 = vector.load %arg2[%c0_1, %c0_2] : memref<128x128xf32, #tpu.memory_space<vmem>>, vector<128x128xf32>
    %c0_3 = arith.constant 0 : index
    %c0_4 = arith.constant 0 : index
    %6 = vector.load %arg3[%c0_3, %c0_4] : memref<128x128xf32, #tpu.memory_space<vmem>>, vector<128x128xf32>
    %cst_5 = arith.constant dense<0.000000e+00> : vector<8x128xf32>
    %7 = tpu.matmul %3, %5, %cst_5 {dimension_numbers = #tpu.dot_dimension_numbers<[1], [0], [0], [1], [0, 0, 1, 1], [], []>} : vector<8x128xf32>, vector<128x128xf32>, vector<8x128xf32> -> vector<8x128xf32>
    %cst_6 = arith.constant dense<0.000000e+00> : vector<8x128xf32>
    %8 = tpu.matmul %4, %6, %cst_6 {dimension_numbers = #tpu.dot_dimension_numbers<[1], [0], [0], [1], [0, 0, 1, 1], [], []>} : vector<8x128xf32>, vector<128x128xf32>, vector<8x128xf32> -> vector<8x128xf32>
    %9 = arith.subf %7, %8 : vector<8x128xf32>
    %c0_7 = arith.constant 0 : index
    %c0_8 = arith.constant 0 : index
    %10 = vector.load %arg4[%c0_7, %c0_8] : memref<1x128xf32, #tpu.memory_space<vmem>>, vector<1x128xf32>
    %11 = vector.broadcast %10 : vector<1x128xf32> to vector<8x128xf32>
    %12 = arith.addf %9, %11 : vector<8x128xf32>
    %cst_9 = arith.constant dense<0.000000e+00> : vector<8x128xf32>
    %13 = tpu.matmul %4, %5, %cst_9 {dimension_numbers = #tpu.dot_dimension_numbers<[1], [0], [0], [1], [0, 0, 1, 1], [], []>} : vector<8x128xf32>, vector<128x128xf32>, vector<8x128xf32> -> vector<8x128xf32>
    %cst_10 = arith.constant dense<0.000000e+00> : vector<8x128xf32>
    %14 = tpu.matmul %3, %6, %cst_10 {dimension_numbers = #tpu.dot_dimension_numbers<[1], [0], [0], [1], [0, 0, 1, 1], [], []>} : vector<8x128xf32>, vector<128x128xf32>, vector<8x128xf32> -> vector<8x128xf32>
    %15 = arith.addf %13, %14 : vector<8x128xf32>
    %c0_11 = arith.constant 0 : index
    %c0_12 = arith.constant 0 : index
    %16 = vector.load %arg5[%c0_11, %c0_12] : memref<1x128xf32, #tpu.memory_space<vmem>>, vector<1x128xf32>
    %17 = vector.broadcast %16 : vector<1x128xf32> to vector<8x128xf32>
    %18 = arith.addf %15, %17 : vector<8x128xf32>
    %19 = arith.mulf %12, %12 : vector<8x128xf32>
    %20 = arith.mulf %18, %18 : vector<8x128xf32>
    %21 = arith.addf %19, %20 : vector<8x128xf32>
    %cst_13 = arith.constant 1.000000e-30 : f32
    %22 = vector.broadcast %cst_13 : f32 to vector<8x128xf32>
    %23 = arith.maximumf %21, %22 : vector<8x128xf32>
    %24 = math.sqrt %23 : vector<8x128xf32>
    %cst_14 = arith.constant 1.000000e+00 : f32
    %25 = vector.broadcast %cst_14 : f32 to vector<8x128xf32>
    %26 = arith.divf %25, %24 : vector<8x128xf32>
    %c0_15 = arith.constant 0 : index
    %c0_16 = arith.constant 0 : index
    %27 = vector.load %arg6[%c0_15, %c0_16] : memref<1x128xf32, #tpu.memory_space<vmem>>, vector<1x128xf32>
    %c0_17 = arith.constant 0 : index
    %c0_18 = arith.constant 0 : index
    %28 = vector.load %arg7[%c0_17, %c0_18] : memref<1x128xf32, #tpu.memory_space<vmem>>, vector<1x128xf32>
    %29 = vector.broadcast %27 : vector<1x128xf32> to vector<8x128xf32>
    %30 = arith.mulf %29, %12 : vector<8x128xf32>
    %31 = vector.broadcast %28 : vector<1x128xf32> to vector<8x128xf32>
    %32 = arith.mulf %31, %18 : vector<8x128xf32>
    %33 = arith.addf %30, %32 : vector<8x128xf32>
    %34 = arith.mulf %33, %26 : vector<8x128xf32>
    %35 = vector.broadcast %28 : vector<1x128xf32> to vector<8x128xf32>
    %36 = arith.mulf %35, %12 : vector<8x128xf32>
    %37 = vector.broadcast %27 : vector<1x128xf32> to vector<8x128xf32>
    %38 = arith.mulf %37, %18 : vector<8x128xf32>
    %39 = arith.subf %36, %38 : vector<8x128xf32>
    %40 = arith.mulf %39, %26 : vector<8x128xf32>
    %c0_19 = arith.constant 0 : index
    %c0_20 = arith.constant 0 : index
    %41 = vector.load %arg8[%c0_19, %c0_20] : memref<128x128xf32, #tpu.memory_space<vmem>>, vector<128x128xf32>
    %c0_21 = arith.constant 0 : index
    %c0_22 = arith.constant 0 : index
    %42 = vector.load %arg9[%c0_21, %c0_22] : memref<128x128xf32, #tpu.memory_space<vmem>>, vector<128x128xf32>
    %cst_23 = arith.constant dense<0.000000e+00> : vector<8x128xf32>
    %43 = tpu.matmul %34, %41, %cst_23 {dimension_numbers = #tpu.dot_dimension_numbers<[1], [0], [0], [1], [0, 0, 1, 1], [], []>} : vector<8x128xf32>, vector<128x128xf32>, vector<8x128xf32> -> vector<8x128xf32>
    %cst_24 = arith.constant dense<0.000000e+00> : vector<8x128xf32>
    %44 = tpu.matmul %40, %42, %cst_24 {dimension_numbers = #tpu.dot_dimension_numbers<[1], [0], [0], [1], [0, 0, 1, 1], [], []>} : vector<8x128xf32>, vector<128x128xf32>, vector<8x128xf32> -> vector<8x128xf32>
    %45 = arith.subf %43, %44 : vector<8x128xf32>
    %c0_25 = arith.constant 0 : index
    %c0_26 = arith.constant 0 : index
    %46 = vector.load %arg10[%c0_25, %c0_26] : memref<1x128xf32, #tpu.memory_space<vmem>>, vector<1x128xf32>
    %47 = vector.broadcast %46 : vector<1x128xf32> to vector<8x128xf32>
    %48 = arith.addf %45, %47 : vector<8x128xf32>
    %cst_27 = arith.constant dense<0.000000e+00> : vector<8x128xf32>
    %49 = tpu.matmul %40, %41, %cst_27 {dimension_numbers = #tpu.dot_dimension_numbers<[1], [0], [0], [1], [0, 0, 1, 1], [], []>} : vector<8x128xf32>, vector<128x128xf32>, vector<8x128xf32> -> vector<8x128xf32>
    %cst_28 = arith.constant dense<0.000000e+00> : vector<8x128xf32>
    %50 = tpu.matmul %34, %42, %cst_28 {dimension_numbers = #tpu.dot_dimension_numbers<[1], [0], [0], [1], [0, 0, 1, 1], [], []>} : vector<8x128xf32>, vector<128x128xf32>, vector<8x128xf32> -> vector<8x128xf32>
    %51 = arith.addf %49, %50 : vector<8x128xf32>
    %c0_29 = arith.constant 0 : index
    %c0_30 = arith.constant 0 : index
    %52 = vector.load %arg11[%c0_29, %c0_30] : memref<1x128xf32, #tpu.memory_space<vmem>>, vector<1x128xf32>
    %53 = vector.broadcast %52 : vector<1x128xf32> to vector<8x128xf32>
    %54 = arith.addf %51, %53 : vector<8x128xf32>
    %c0_31 = arith.constant 0 : index
    %c0_32 = arith.constant 0 : index
    %55 = vector.load %arg13[%c0_31, %c0_32] : memref<1x128xf32, #tpu.memory_space<vmem>>, vector<1x128xf32>
    %56 = vector.broadcast %55 : vector<1x128xf32> to vector<8x128xf32>
    %57 = arith.mulf %56, %48 : vector<8x128xf32>
    %c0_33 = arith.constant 0 : index
    %c0_34 = arith.constant 0 : index
    %58 = vector.load %arg12[%c0_33, %c0_34] : memref<1x128xf32, #tpu.memory_space<vmem>>, vector<1x128xf32>
    %59 = vector.broadcast %58 : vector<1x128xf32> to vector<8x128xf32>
    %60 = arith.mulf %59, %54 : vector<8x128xf32>
    %61 = arith.subf %57, %60 : vector<8x128xf32>
    %62 = arith.mulf %48, %48 : vector<8x128xf32>
    %63 = arith.mulf %54, %54 : vector<8x128xf32>
    %64 = arith.addf %62, %63 : vector<8x128xf32>
    %cst_35 = arith.constant 1.000000e-30 : f32
    %65 = vector.broadcast %cst_35 : f32 to vector<8x128xf32>
    %66 = arith.maximumf %64, %65 : vector<8x128xf32>
    %67 = arith.mulf %61, %61 : vector<8x128xf32>
    %68 = arith.divf %67, %66 : vector<8x128xf32>
    %c0_36 = arith.constant 0 : index
    %c0_37 = arith.constant 0 : index
    %69 = vector.load %arg14[%c0_36, %c0_37] : memref<8x128xf32, #tpu.memory_space<vmem>>, vector<8x128xf32>
    tpu.vector_store %arg14[%c0_36, %c0_37], %68 {strides = array<i32>} : memref<8x128xf32, #tpu.memory_space<vmem>>, vector<8x128xf32>,
    return
  }
  func.func @transform_0(%arg0: i32) -> (i32, i32) {
    %c0_i32 = arith.constant 0 : i32
    %c0_i32_0 = arith.constant 0 : i32
    return %arg0, %c0_i32 : i32, i32
  }
  func.func @transform_1(%arg0: i32) -> (i32, i32) {
    %c0_i32 = arith.constant 0 : i32
    %c0_i32_0 = arith.constant 0 : i32
    %c0_i32_1 = arith.constant 0 : i32
    return %c0_i32, %c0_i32_0 : i32, i32
  }
  func.func @transform_2(%arg0: i32) -> (i32, i32) {
    %c0_i32 = arith.constant 0 : i32
    %c0_i32_0 = arith.constant 0 : i32
    %c0_i32_1 = arith.constant 0 : i32
    return %c0_i32, %c0_i32_0 : i32, i32
  }
  func.func @transform_3(%arg0: i32) -> (i32, i32) {
    %c0_i32 = arith.constant 0 : i32
    %c0_i32_0 = arith.constant 0 : i32
    %c0_i32_1 = arith.constant 0 : i32
    return %c0_i32, %c0_i32_0 : i32, i32
  }
  func.func @transform_4(%arg0: i32) -> (i32, i32) {
    %c0_i32 = arith.constant 0 : i32
    %c0_i32_0 = arith.constant 0 : i32
    %c0_i32_1 = arith.constant 0 : i32
    return %c0_i32, %c0_i32_0 : i32, i32
  }
  func.func @transform_5(%arg0: i32) -> (i32, i32) {
    %c0_i32 = arith.constant 0 : i32
    %c0_i32_0 = arith.constant 0 : i32
    %c0_i32_1 = arith.constant 0 : i32
    return %c0_i32, %c0_i32_0 : i32, i32
  }
  func.func @transform_6(%arg0: i32) -> (i32, i32) {
    %c0_i32 = arith.constant 0 : i32
    %c0_i32_0 = arith.constant 0 : i32
    %c0_i32_1 = arith.constant 0 : i32
    return %c0_i32, %c0_i32_0 : i32, i32
  }
  func.func @transform_7(%arg0: i32) -> (i32, i32) {
    %c0_i32 = arith.constant 0 : i32
    %c0_i32_0 = arith.constant 0 : i32
    %c0_i32_1 = arith.constant 0 : i32
    return %c0_i32, %c0_i32_0 : i32, i32
  }
  func.func @transform_8(%arg0: i32) -> (i32, i32) {
    %c0_i32 = arith.constant 0 : i32
    %c0_i32_0 = arith.constant 0 : i32
    %c0_i32_1 = arith.constant 0 : i32
    return %c0_i32, %c0_i32_0 : i32, i32
  }
  func.func @transform_9(%arg0: i32) -> (i32, i32) {
    %c0_i32 = arith.constant 0 : i32
    %c0_i32_0 = arith.constant 0 : i32
    %c0_i32_1 = arith.constant 0 : i32
    return %c0_i32, %c0_i32_0 : i32, i32
  }
  func.func @transform_10(%arg0: i32) -> (i32, i32) {
    %c0_i32 = arith.constant 0 : i32
    %c0_i32_0 = arith.constant 0 : i32
    %c0_i32_1 = arith.constant 0 : i32
    return %c0_i32, %c0_i32_0 : i32, i32
  }
  func.func @transform_11(%arg0: i32) -> (i32, i32) {
    %c0_i32 = arith.constant 0 : i32
    %c0_i32_0 = arith.constant 0 : i32
    %c0_i32_1 = arith.constant 0 : i32
    return %c0_i32, %c0_i32_0 : i32, i32
  }
  func.func @transform_12(%arg0: i32) -> (i32, i32) {
    %c0_i32 = arith.constant 0 : i32
    %c0_i32_0 = arith.constant 0 : i32
    %c0_i32_1 = arith.constant 0 : i32
    return %c0_i32, %c0_i32_0 : i32, i32
  }
  func.func @transform_13(%arg0: i32) -> (i32, i32) {
    %c0_i32 = arith.constant 0 : i32
    %c0_i32_0 = arith.constant 0 : i32
    return %arg0, %c0_i32 : i32, i32
  }
}

module attributes {stable_mosaic.version = 11 : i64} {
  func.func @iqnn_kernel(%arg0: i32, %arg1: memref<8x128xf32, #tpu.memory_space<vmem>>, %arg2: memref<128x128xf32, #tpu.memory_space<vmem>>, %arg3: memref<128x128xf32, #tpu.memory_space<vmem>>, %arg4: memref<1x128xf32, #tpu.memory_space<vmem>>, %arg5: memref<1x128xf32, #tpu.memory_space<vmem>>, %arg6: memref<1x128xf32, #tpu.memory_space<vmem>>, %arg7: memref<1x128xf32, #tpu.memory_space<vmem>>, %arg8: memref<128x128xf32, #tpu.memory_space<vmem>>, %arg9: memref<128x128xf32, #tpu.memory_space<vmem>>, %arg10: memref<1x128xf32, #tpu.memory_space<vmem>>, %arg11: memref<1x128xf32, #tpu.memory_space<vmem>>, %arg12: memref<1x128xf32, #tpu.memory_space<vmem>>, %arg13: memref<1x128xf32, #tpu.memory_space<vmem>>, %arg14: memref<8x128xf32, #tpu.memory_space<vmem>>) attributes {dimension_semantics = [#tpu.dimension_semantics<parallel>], iteration_bounds = array<i64: 1>, scalar_prefetch = 0 : i64, scratch_operands = 0 : i64, tpu.core_type = #tpu.core_type<tc>, window_params = [{transform_indices = @transform_0, window_bounds = array<i64: 8, 128>}, {pipeline_mode = #tpu.pipeline_mode<synchronous>, transform_indices = @transform_1, window_bounds = array<i64: 128, 128>}, {pipeline_mode = #tpu.pipeline_mode<synchronous>, transform_indices = @transform_2, window_bounds = array<i64: 128, 128>}, {pipeline_mode = #tpu.pipeline_mode<synchronous>, transform_indices = @transform_3, window_bounds = array<i64: 1, 128>}, {pipeline_mode = #tpu.pipeline_mode<synchronous>, transform_indices = @transform_4, window_bounds = array<i64: 1, 128>}, {pipeline_mode = #tpu.pipeline_mode<synchronous>, transform_indices = @transform_5, window_bounds = array<i64: 1, 128>}, {pipeline_mode = #tpu.pipeline_mode<synchronous>, transform_indices = @transform_6, window_bounds = array<i64: 1, 128>}, {pipeline_mode = #tpu.pipeline_mode<synchronous>, transform_indices = @transform_7, window_bounds = array<i64: 128, 128>}, {pipeline_mode = #tpu.pipeline_mode<synchronous>, transform_indices = @transform_8, window_bounds = array<i64: 128, 128>}, {pipeline_mode = #tpu.pipeline_mode<synchronous>, transform_indices = @transform_9, window_bounds = array<i64: 1, 128>}, {pipeline_mode = #tpu.pipeline_mode<synchronous>, transform_indices = @transform_10, window_bounds = array<i64: 1, 128>}, {pipeline_mode = #tpu.pipeline_mode<synchronous>, transform_indices = @transform_11, window_bounds = array<i64: 1, 128>}, {pipeline_mode = #tpu.pipeline_mode<synchronous>, transform_indices = @transform_12, window_bounds = array<i64: 1, 128>}, {transform_indices = @transform_13, window_bounds = array<i64: 8, 128>}]} {
    %c0 = arith.constant 0 : index
    %c0_0 = arith.constant 0 : index
    %0 = vector.load %arg1[%c0, %c0_0] : memref<8x128xf32, #tpu.memory_space<vmem>>, vector<8x128xf32>
    %cst = arith.constant 1.57079637 : f32
    %1 = vector.broadcast %cst : f32 to vector<8x128xf32>
    %2 = arith.mulf %0, %1 : vector<8x128xf32>
    %3 = math.cos %2 : vector<8x128xf32>
    %4 = math.sin %2 : vector<8x128xf32>
    %c0_1 = arith.constant 0 : index
    %c0_2 = arith.constant 0 : index
    %5 = vector.load %arg2[%c0_1, %c0_2] : memref<128x128xf32, #tpu.memory_space<vmem>>, vector<128x128xf32>
    %c0_3 = arith.constant 0 : index
    %c0_4 = arith.constant 0 : index
    %6 = vector.load %arg3[%c0_3, %c0_4] : memref<128x128xf32, #tpu.memory_space<vmem>>, vector<128x128xf32>
    %cst_5 = arith.constant dense<0.000000e+00> : vector<8x128xf32>
    %7 = tpu.matmul %3, %5, %cst_5 {dimension_numbers = #tpu.dot_dimension_numbers<[1], [0], [0], [1], [0, 0, 1, 1], [], []>} : vector<8x128xf32>, vector<128x128xf32>, vector<8x128xf32> -> vector<8x128xf32>
    %cst_6 = arith.constant dense<0.000000e+00> : vector<8x128xf32>
    %8 = tpu.matmul %4, %6, %cst_6 {dimension_numbers = #tpu.dot_dimension_numbers<[1], [0], [0], [1], [0, 0, 1, 1], [], []>} : vector<8x128xf32>, vector<128x128xf32>, vector<8x128xf32> -> vector<8x128xf32>
    %9 = arith.subf %7, %8 : vector<8x128xf32>
    %c0_7 = arith.constant 0 : index
    %c0_8 = arith.constant 0 : index
    %10 = vector.load %arg4[%c0_7, %c0_8] : memref<1x128xf32, #tpu.memory_space<vmem>>, vector<1x128xf32>
    %11 = vector.broadcast %10 : vector<1x128xf32> to vector<8x128xf32>
    %12 = arith.addf %9, %11 : vector<8x128xf32>
    %cst_9 = arith.constant dense<0.000000e+00> : vector<8x128xf32>
    %13 = tpu.matmul %4, %5, %cst_9 {dimension_numbers = #tpu.dot_dimension_numbers<[1], [0], [0], [1], [0, 0, 1, 1], [], []>} : vector<8x128xf32>, vector<128x128xf32>, vector<8x128xf32> -> vector<8x128xf32>
    %cst_10 = arith.constant dense<0.000000e+00> : vector<8x128xf32>
    %14 = tpu.matmul %3, %6, %cst_10 {dimension_numbers = #tpu.dot_dimension_numbers<[1], [0], [0], [1], [0, 0, 1, 1], [], []>} : vector<8x128xf32>, vector<128x128xf32>, vector<8x128xf32> -> vector<8x128xf32>
    %15 = arith.addf %13, %14 : vector<8x128xf32>
    %c0_11 = arith.constant 0 : index
    %c0_12 = arith.constant 0 : index
    %16 = vector.load %arg5[%c0_11, %c0_12] : memref<1x128xf32, #tpu.memory_space<vmem>>, vector<1x128xf32>
    %17 = vector.broadcast %16 : vector<1x128xf32> to vector<8x128xf32>
    %18 = arith.addf %15, %17 : vector<8x128xf32>
    %19 = arith.mulf %12, %12 : vector<8x128xf32>
    %20 = arith.mulf %18, %18 : vector<8x128xf32>
    %21 = arith.addf %19, %20 : vector<8x128xf32>
    %cst_13 = arith.constant 1.000000e-30 : f32
    %22 = vector.broadcast %cst_13 : f32 to vector<8x128xf32>
    %23 = arith.maximumf %21, %22 : vector<8x128xf32>
    %24 = math.sqrt %23 : vector<8x128xf32>
    %cst_14 = arith.constant 1.000000e+00 : f32
    %25 = vector.broadcast %cst_14 : f32 to vector<8x128xf32>
    %26 = arith.divf %25, %24 : vector<8x128xf32>
    %c0_15 = arith.constant 0 : index
    %c0_16 = arith.constant 0 : index
    %27 = vector.load %arg6[%c0_15, %c0_16] : memref<1x128xf32, #tpu.memory_space<vmem>>, vector<1x128xf32>
    %c0_17 = arith.constant 0 : index
    %c0_18 = arith.constant 0 : index
    %28 = vector.load %arg7[%c0_17, %c0_18] : memref<1x128xf32, #tpu.memory_space<vmem>>, vector<1x128xf32>
    %29 = vector.broadcast %27 : vector<1x128xf32> to vector<8x128xf32>
    %30 = arith.mulf %29, %12 : vector<8x128xf32>
    %31 = vector.broadcast %28 : vector<1x128xf32> to vector<8x128xf32>
    %32 = arith.mulf %31, %18 : vector<8x128xf32>
    %33 = arith.addf %30, %32 : vector<8x128xf32>
    %34 = arith.mulf %33, %26 : vector<8x128xf32>
    %35 = vector.broadcast %28 : vector<1x128xf32> to vector<8x128xf32>
    %36 = arith.mulf %35, %12 : vector<8x128xf32>
    %37 = vector.broadcast %27 : vector<1x128xf32> to vector<8x128xf32>
    %38 = arith.mulf %37, %18 : vector<8x128xf32>
    %39 = arith.subf %36, %38 : vector<8x128xf32>
    %40 = arith.mulf %39, %26 : vector<8x128xf32>
    %c0_19 = arith.constant 0 : index
    %c0_20 = arith.constant 0 : index
    %41 = vector.load %arg8[%c0_19, %c0_20] : memref<128x128xf32, #tpu.memory_space<vmem>>, vector<128x128xf32>
    %c0_21 = arith.constant 0 : index
    %c0_22 = arith.constant 0 : index
    %42 = vector.load %arg9[%c0_21, %c0_22] : memref<128x128xf32, #tpu.memory_space<vmem>>, vector<128x128xf32>
    %cst_23 = arith.constant dense<0.000000e+00> : vector<8x128xf32>
    %43 = tpu.matmul %34, %41, %cst_23 {dimension_numbers = #tpu.dot_dimension_numbers<[1], [0], [0], [1], [0, 0, 1, 1], [], []>} : vector<8x128xf32>, vector<128x128xf32>, vector<8x128xf32> -> vector<8x128xf32>
    %cst_24 = arith.constant dense<0.000000e+00> : vector<8x128xf32>
    %44 = tpu.matmul %40, %42, %cst_24 {dimension_numbers = #tpu.dot_dimension_numbers<[1], [0], [0], [1], [0, 0, 1, 1], [], []>} : vector<8x128xf32>, vector<128x128xf32>, vector<8x128xf32> -> vector<8x128xf32>
    %45 = arith.subf %43, %44 : vector<8x128xf32>
    %c0_25 = arith.constant 0 : index
    %c0_26 = arith.constant 0 : index
    %46 = vector.load %arg10[%c0_25, %c0_26] : memref<1x128xf32, #tpu.memory_space<vmem>>, vector<1x128xf32>
    %47 = vector.broadcast %46 : vector<1x128xf32> to vector<8x128xf32>
    %48 = arith.addf %45, %47 : vector<8x128xf32>
    %cst_27 = arith.constant dense<0.000000e+00> : vector<8x128xf32>
    %49 = tpu.matmul %40, %41, %cst_27 {dimension_numbers = #tpu.dot_dimension_numbers<[1], [0], [0], [1], [0, 0, 1, 1], [], []>} : vector<8x128xf32>, vector<128x128xf32>, vector<8x128xf32> -> vector<8x128xf32>
    %cst_28 = arith.constant dense<0.000000e+00> : vector<8x128xf32>
    %50 = tpu.matmul %34, %42, %cst_28 {dimension_numbers = #tpu.dot_dimension_numbers<[1], [0], [0], [1], [0, 0, 1, 1], [], []>} : vector<8x128xf32>, vector<128x128xf32>, vector<8x128xf32> -> vector<8x128xf32>
    %51 = arith.addf %49, %50 : vector<8x128xf32>
    %c0_29 = arith.constant 0 : index
    %c0_30 = arith.constant 0 : index
    %52 = vector.load %arg11[%c0_29, %c0_30] : memref<1x128xf32, #tpu.memory_space<vmem>>, vector<1x128xf32>
    %53 = vector.broadcast %52 : vector<1x128xf32> to vector<8x128xf32>
    %54 = arith.addf %51, %53 : vector<8x128xf32>
    %c0_31 = arith.constant 0 : index
    %c0_32 = arith.constant 0 : index
    %55 = vector.load %arg13[%c0_31, %c0_32] : memref<1x128xf32, #tpu.memory_space<vmem>>, vector<1x128xf32>
    %56 = vector.broadcast %55 : vector<1x128xf32> to vector<8x128xf32>
    %57 = arith.mulf %56, %48 : vector<8x128xf32>
    %c0_33 = arith.constant 0 : index
    %c0_34 = arith.constant 0 : index
    %58 = vector.load %arg12[%c0_33, %c0_34] : memref<1x128xf32, #tpu.memory_space<vmem>>, vector<1x128xf32>
    %59 = vector.broadcast %58 : vector<1x128xf32> to vector<8x128xf32>
    %60 = arith.mulf %59, %54 : vector<8x128xf32>
    %61 = arith.subf %57, %60 : vector<8x128xf32>
    %62 = arith.mulf %48, %48 : vector<8x128xf32>
    %63 = arith.mulf %54, %54 : vector<8x128xf32>
    %64 = arith.addf %62, %63 : vector<8x128xf32>
    %cst_35 = arith.constant 1.000000e-30 : f32
    %65 = vector.broadcast %cst_35 : f32 to vector<8x128xf32>
    %66 = arith.maximumf %64, %65 : vector<8x128xf32>
    %67 = arith.mulf %61, %61 : vector<8x128xf32>
    %68 = arith.divf %67, %66 : vector<8x128xf32>
    %c0_36 = arith.constant 0 : index
    %c0_37 = arith.constant 0 : index
    %69 = vector.load %arg14[%c0_36, %c0_37] : memref<8x128xf32, #tpu.memory_space<vmem>>, vector<8x128xf32>
    tpu.vector_store %arg14[%c0_36, %c0_37], %68 {strides = array<i32>} : memref<8x128xf32, #tpu.memory_space<vmem>>, vector<8x128xf32>,
    return
  }
  func.func @transform_0(%arg0: i32) -> (i32, i32) {
    %c0_i32 = arith.constant 0 : i32
    %c0_i32_0 = arith.constant 0 : i32
    return %arg0, %c0_i32 : i32, i32
  }
  func.func @transform_1(%arg0: i32) -> (i32, i32) {
    %c0_i32 = arith.constant 0 : i32
    %c0_i32_0 = arith.constant 0 : i32
    %c0_i32_1 = arith.constant 0 : i32
    return %c0_i32, %c0_i32_0 : i32, i32
  }
  func.func @transform_2(%arg0: i32) -> (i32, i32) {
    %c0_i32 = arith.constant 0 : i32
    %c0_i32_0 = arith.constant 0 : i32
    %c0_i32_1 = arith.constant 0 : i32
    return %c0_i32, %c0_i32_0 : i32, i32
  }
  func.func @transform_3(%arg0: i32) -> (i32, i32) {
    %c0_i32 = arith.constant 0 : i32
    %c0_i32_0 = arith.constant 0 : i32
    %c0_i32_1 = arith.constant 0 : i32
    return %c0_i32, %c0_i32_0 : i32, i32
  }
  func.func @transform_4(%arg0: i32) -> (i32, i32) {
    %c0_i32 = arith.constant 0 : i32
    %c0_i32_0 = arith.constant 0 : i32
    %c0_i32_1 = arith.constant 0 : i32
    return %c0_i32, %c0_i32_0 : i32, i32
  }
  func.func @transform_5(%arg0: i32) -> (i32, i32) {
    %c0_i32 = arith.constant 0 : i32
    %c0_i32_0 = arith.constant 0 : i32
    %c0_i32_1 = arith.constant 0 : i32
    return %c0_i32, %c0_i32_0 : i32, i32
  }
  func.func @transform_6(%arg0: i32) -> (i32, i32) {
    %c0_i32 = arith.constant 0 : i32
    %c0_i32_0 = arith.constant 0 : i32
    %c0_i32_1 = arith.constant 0 : i32
    return %c0_i32, %c0_i32_0 : i32, i32
  }
  func.func @transform_7(%arg0: i32) -> (i32, i32) {
    %c0_i32 = arith.constant 0 : i32
    %c0_i32_0 = arith.constant 0 : i32
    %c0_i32_1 = arith.constant 0 : i32
    return %c0_i32, %c0_i32_0 : i32, i32
  }
  func.func @transform_8(%arg0: i32) -> (i32, i32) {
    %c0_i32 = arith.constant 0 : i32
    %c0_i32_0 = arith.constant 0 : i32
    %c0_i32_1 = arith.constant 0 : i32
    return %c0_i32, %c0_i32_0 : i32, i32
  }
  func.func @transform_9(%arg0: i32) -> (i32, i32) {
    %c0_i32 = arith.constant 0 : i32
    %c0_i32_0 = arith.constant 0 : i32
    %c0_i32_1 = arith.constant 0 : i32
    return %c0_i32, %c0_i32_0 : i32, i32
  }
  func.func @transform_10(%arg0: i32) -> (i32, i32) {
    %c0_i32 = arith.constant 0 : i32
    %c0_i32_0 = arith.constant 0 : i32
    %c0_i32_1 = arith.constant 0 : i32
    return %c0_i32, %c0_i32_0 : i32, i32
  }
  func.func @transform_11(%arg0: i32) -> (i32, i32) {
    %c0_i32 = arith.constant 0 : i32
    %c0_i32_0 = arith.constant 0 : i32
    %c0_i32_1 = arith.constant 0 : i32
    return %c0_i32, %c0_i32_0 : i32, i32
  }
  func.func @transform_12(%arg0: i32) -> (i32, i32) {
    %c0_i32 = arith.constant 0 : i32
    %c0_i32_0 = arith.constant 0 : i32
    %c0_i32_1 = arith.constant 0 : i32
    return %c0_i32, %c0_i32_0 : i32, i32
  }
  func.func @transform_13(%arg0: i32) -> (i32, i32) {
    %c0_i32 = arith.constant 0 : i32
    %c0_i32_0 = arith.constant 0 : i32
    return %arg0, %c0_i32 : i32, i32
  }
}

</mosaic_0001>

<llo_original>
// kernel: tpu_custom_call.1
$region0: #{tpu_custom_call.1}
  #allocation0 [shape = 'u32[]', space=smem, size = 0x4, offset = 0x4, fixed_abs, tag = 'smem constant byte address 0x4 - core index']
  #allocation1 [shape = 'u32[144,128]{1,0:T(1,128)}', space=vmem, size = 0x12000, scoped, tag = 'internal scratch']
  %s0 = inlined_call_operand.hbm [shape: f32[8,128], index: 0, kind: input, shape index: {}]
  %s1 = inlined_call_operand.hbm [shape: f32[128,128], index: 1, kind: input, shape index: {}]
  %s2 = inlined_call_operand.hbm [shape: f32[128,128], index: 2, kind: input, shape index: {}]
  %s3 = inlined_call_operand.hbm [shape: f32[1,128], index: 3, kind: input, shape index: {}]
  %s4 = inlined_call_operand.hbm [shape: f32[1,128], index: 4, kind: input, shape index: {}]
  %s5 = inlined_call_operand.hbm [shape: f32[1,128], index: 5, kind: input, shape index: {}]
  %s6 = inlined_call_operand.hbm [shape: f32[1,128], index: 6, kind: input, shape index: {}]
  %s7 = inlined_call_operand.hbm [shape: f32[128,128], index: 7, kind: input, shape index: {}]
  %s8 = inlined_call_operand.hbm [shape: f32[128,128], index: 8, kind: input, shape index: {}]
  %s9 = inlined_call_operand.hbm [shape: f32[1,128], index: 9, kind: input, shape index: {}]
  %s10 = inlined_call_operand.hbm [shape: f32[1,128], index: 10, kind: input, shape index: {}]
  %s11 = inlined_call_operand.hbm [shape: f32[1,128], index: 11, kind: input, shape index: {}]
  %s12 = inlined_call_operand.hbm [shape: f32[1,128], index: 12, kind: input, shape index: {}]
  %s13 = inlined_call_operand.hbm [shape: f32[8,128], index: 13, kind: output, shape index: {}]
  %s14 = sld [smem:[#allocation0]]
  $region114: #{tpu_custom_call.1} parent=0
    _
  %s16 = ssub.s32 1, %s14
  %s17 = scalar_select 0, %s16, %s14
  $region1: #{tpu_custom_call.1} parent=0
    #allocation2 [shape = 'u8[4096]{0}', space=vmem, size = 0x1000, scoped, tag = 'input window, operand 0, single buffered']
    #allocation3 [shape = 's32[1]{0}', space=sflag, size = 0x4, scoped, tag = 'scoped memory for tpu_custom_call.1']
    #allocation4 [shape = 's32[1]{0}', space=sflag, size = 0x4, scoped, tag = 'scoped memory for tpu_custom_call.1']
    #allocation5 [shape = 'u8[65536]{0}', space=vmem, size = 0x10000, scoped, tag = 'input window, operand 1, single buffered']
    #allocation6 [shape = 's32[1]{0}', space=sflag, size = 0x4, scoped, tag = 'scoped memory for tpu_custom_call.1']
    #allocation7 [shape = 'u8[65536]{0}', space=vmem, size = 0x10000, scoped, tag = 'input window, operand 2, single buffered']
    #allocation8 [shape = 'u8[512]{0}', space=vmem, size = 0x400, scoped, tag = 'input window, operand 3, single buffered']
    #allocation9 [shape = 's32[1]{0}', space=sflag, size = 0x4, scoped, tag = 'scoped memory for tpu_custom_call.1']
    #allocation10 [shape = 'u8[512]{0}', space=vmem, size = 0x400, scoped, tag = 'input window, operand 4, single buffered']
    #allocation11 [shape = 'u8[512]{0}', space=vmem, size = 0x400, scoped, tag = 'input window, operand 5, single buffered']
    #allocation12 [shape = 's32[1]{0}', space=sflag, size = 0x4, scoped, tag = 'scoped memory for tpu_custom_call.1']
    #allocation13 [shape = 'u8[512]{0}', space=vmem, size = 0x400, scoped, tag = 'input window, operand 6, single buffered']
    #allocation14 [shape = 'u8[65536]{0}', space=vmem, size = 0x10000, scoped, tag = 'input window, operand 7, single buffered']
    #allocation15 [shape = 's32[1]{0}', space=sflag, size = 0x4, scoped, tag = 'scoped memory for tpu_custom_call.1']
    #allocation16 [shape = 'u8[65536]{0}', space=vmem, size = 0x10000, scoped, tag = 'input window, operand 8, single buffered']
    #allocation17 [shape = 'u8[512]{0}', space=vmem, size = 0x400, scoped, tag = 'input window, operand 9, single buffered']
    #allocation18 [shape = 's32[1]{0}', space=sflag, size = 0x4, scoped, tag = 'scoped memory for tpu_custom_call.1']
    #allocation19 [shape = 'u8[512]{0}', space=vmem, size = 0x400, scoped, tag = 'input window, operand 10, single buffered']
    #allocation20 [shape = 'u8[512]{0}', space=vmem, size = 0x400, scoped, tag = 'input window, operand 11, single buffered']
    #allocation21 [shape = 's32[1]{0}', space=sflag, size = 0x4, scoped, tag = 'scoped memory for tpu_custom_call.1']
    #allocation22 [shape = 'u8[512]{0}', space=vmem, size = 0x400, scoped, tag = 'input window, operand 12, single buffered']
    #allocation23 [shape = 'u8[4096]{0}', space=vmem, size = 0x1000, scoped, tag = 'output window, operand 0, single buffered']
    %18 = vsyncpa [#allocation3], 0
    %19 = vsyncpa [#allocation6], 0
    %20 = vsyncpa [#allocation9], 0
    %21 = vsyncpa [#allocation12], 0
    %22 = vsyncpa [#allocation15], 0
    %23 = vsyncpa [#allocation18], 0
    %24 = vsyncpa [#allocation21], 0
    %25 = vsyncpa [#allocation4], 0
    // Predicated region
    $region2: #{tpu_custom_call.1} parent=1 // pred_check
      _
    $region3: #{tpu_custom_call.1} parent=1 // pred_check_branch
      %27 = sbr.rel (0) target = $region5
    $region4: #{tpu_custom_call.1} parent=1 // pred_region
      %s29 = ssub.s32 128, 128
      %30 = vsyncadd [#allocation3], %s29
      %s32 = sshll.u32 [#allocation2], 4
      %s33 = int_to_ptr.vmem [resolvable:$true] %s32
      %35 = dma.hbm_to_vmem [thread:$0]  %s0, 128, %s33, [#allocation3]
    $region5: #{tpu_custom_call.1} parent=1 // pred_fallthru
      _
    // Predicated region
    $region6: #{tpu_custom_call.1} parent=1 // pred_check
      _
    $region7: #{tpu_custom_call.1} parent=1 // pred_check_branch
      %37 = sbr.rel (0) target = $region9
    $region8: #{tpu_custom_call.1} parent=1 // pred_region
      %s39 = ssub.s32 2048, 2048
      %40 = vsyncadd [#allocation6], %s39
      %s41 = sshll.u32 [#allocation5], 4
      %s42 = int_to_ptr.vmem [resolvable:$true] %s41
      %47 = dma.hbm_to_vmem [thread:$0]  %s1, 2048, %s42, [#allocation6], 128, 128, 8
    $region9: #{tpu_custom_call.1} parent=1 // pred_fallthru
      _
    // Predicated region
    $region10: #{tpu_custom_call.1} parent=1 // pred_check
      _
    $region11: #{tpu_custom_call.1} parent=1 // pred_check_branch
      %49 = sbr.rel (0) target = $region13
    $region12: #{tpu_custom_call.1} parent=1 // pred_region
      %s51 = ssub.s32 2048, 2048
      %52 = vsyncadd [#allocation6], %s51
      %s53 = sshll.u32 [#allocation7], 4
      %s54 = int_to_ptr.vmem [resolvable:$true] %s53
      %59 = dma.hbm_to_vmem [thread:$0]  %s2, 2048, %s54, [#allocation6], 128, 128, 8
    $region13: #{tpu_custom_call.1} parent=1 // pred_fallthru
      _
    // Predicated region
    $region14: #{tpu_custom_call.1} parent=1 // pred_check
      _
    $region15: #{tpu_custom_call.1} parent=1 // pred_check_branch
      %61 = sbr.rel (0) target = $region17
    $region16: #{tpu_custom_call.1} parent=1 // pred_region
      %s63 = ssub.s32 16, 16
      %64 = vsyncadd [#allocation9], %s63
      %s66 = sshll.u32 [#allocation8], 4
      %s67 = int_to_ptr.vmem [resolvable:$true] %s66
      %69 = dma.hbm_to_vmem [thread:$0]  %s3, 16, %s67, [#allocation9]
    $region17: #{tpu_custom_call.1} parent=1 // pred_fallthru
      _
    // Predicated region
    $region18: #{tpu_custom_call.1} parent=1 // pred_check
      _
    $region19: #{tpu_custom_call.1} parent=1 // pred_check_branch
      %71 = sbr.rel (0) target = $region21
    $region20: #{tpu_custom_call.1} parent=1 // pred_region
      %s73 = ssub.s32 16, 16
      %74 = vsyncadd [#allocation9], %s73
      %s76 = sshll.u32 [#allocation10], 4
      %s77 = int_to_ptr.vmem [resolvable:$true] %s76
      %79 = dma.hbm_to_vmem [thread:$0]  %s4, 16, %s77, [#allocation9]
    $region21: #{tpu_custom_call.1} parent=1 // pred_fallthru
      _
    // Predicated region
    $region22: #{tpu_custom_call.1} parent=1 // pred_check
      _
    $region23: #{tpu_custom_call.1} parent=1 // pred_check_branch
      %81 = sbr.rel (0) target = $region25
    $region24: #{tpu_custom_call.1} parent=1 // pred_region
      %s83 = ssub.s32 16, 16
      %84 = vsyncadd [#allocation12], %s83
      %s86 = sshll.u32 [#allocation11], 4
      %s87 = int_to_ptr.vmem [resolvable:$true] %s86
      %89 = dma.hbm_to_vmem [thread:$0]  %s5, 16, %s87, [#allocation12]
    $region25: #{tpu_custom_call.1} parent=1 // pred_fallthru
      _
    // Predicated region
    $region26: #{tpu_custom_call.1} parent=1 // pred_check
      _
    $region27: #{tpu_custom_call.1} parent=1 // pred_check_branch
      %91 = sbr.rel (0) target = $region29
    $region28: #{tpu_custom_call.1} parent=1 // pred_region
      %s93 = ssub.s32 16, 16
      %94 = vsyncadd [#allocation12], %s93
      %s96 = sshll.u32 [#allocation13], 4
      %s97 = int_to_ptr.vmem [resolvable:$true] %s96
      %99 = dma.hbm_to_vmem [thread:$0]  %s6, 16, %s97, [#allocation12]
    $region29: #{tpu_custom_call.1} parent=1 // pred_fallthru
      _
    // Predicated region
    $region30: #{tpu_custom_call.1} parent=1 // pred_check
      _
    $region31: #{tpu_custom_call.1} parent=1 // pred_check_branch
      %101 = sbr.rel (0) target = $region33
    $region32: #{tpu_custom_call.1} parent=1 // pred_region
      %s103 = ssub.s32 2048, 2048
      %104 = vsyncadd [#allocation15], %s103
      %s105 = sshll.u32 [#allocation14], 4
      %s106 = int_to_ptr.vmem [resolvable:$true] %s105
      %111 = dma.hbm_to_vmem [thread:$0]  %s7, 2048, %s106, [#allocation15], 128, 128, 8
    $region33: #{tpu_custom_call.1} parent=1 // pred_fallthru
      _
    // Predicated region
    $region34: #{tpu_custom_call.1} parent=1 // pred_check
      _
    $region35: #{tpu_custom_call.1} parent=1 // pred_check_branch
      %113 = sbr.rel (0) target = $region37
    $region36: #{tpu_custom_call.1} parent=1 // pred_region
      %s115 = ssub.s32 2048, 2048
      %116 = vsyncadd [#allocation15], %s115
      %s117 = sshll.u32 [#allocation16], 4
      %s118 = int_to_ptr.vmem [resolvable:$true] %s117
      %123 = dma.hbm_to_vmem [thread:$0]  %s8, 2048, %s118, [#allocation15], 128, 128, 8
    $region37: #{tpu_custom_call.1} parent=1 // pred_fallthru
      _
    // Predicated region
    $region38: #{tpu_custom_call.1} parent=1 // pred_check
      _
    $region39: #{tpu_custom_call.1} parent=1 // pred_check_branch
      %125 = sbr.rel (0) target = $region41
    $region40: #{tpu_custom_call.1} parent=1 // pred_region
      %s127 = ssub.s32 16, 16
      %128 = vsyncadd [#allocation18], %s127
      %s130 = sshll.u32 [#allocation17], 4
      %s131 = int_to_ptr.vmem [resolvable:$true] %s130
      %133 = dma.hbm_to_vmem [thread:$0]  %s9, 16, %s131, [#allocation18]
    $region41: #{tpu_custom_call.1} parent=1 // pred_fallthru
      _
    // Predicated region
    $region42: #{tpu_custom_call.1} parent=1 // pred_check
      _
    $region43: #{tpu_custom_call.1} parent=1 // pred_check_branch
      %135 = sbr.rel (0) target = $region45
    $region44: #{tpu_custom_call.1} parent=1 // pred_region
      %s137 = ssub.s32 16, 16
      %138 = vsyncadd [#allocation18], %s137
      %s140 = sshll.u32 [#allocation19], 4
      %s141 = int_to_ptr.vmem [resolvable:$true] %s140
      %143 = dma.hbm_to_vmem [thread:$0]  %s10, 16, %s141, [#allocation18]
    $region45: #{tpu_custom_call.1} parent=1 // pred_fallthru
      _
    // Predicated region
    $region46: #{tpu_custom_call.1} parent=1 // pred_check
      _
    $region47: #{tpu_custom_call.1} parent=1 // pred_check_branch
      %145 = sbr.rel (0) target = $region49
    $region48: #{tpu_custom_call.1} parent=1 // pred_region
      %s147 = ssub.s32 16, 16
      %148 = vsyncadd [#allocation21], %s147
      %s150 = sshll.u32 [#allocation20], 4
      %s151 = int_to_ptr.vmem [resolvable:$true] %s150
      %153 = dma.hbm_to_vmem [thread:$0]  %s11, 16, %s151, [#allocation21]
    $region49: #{tpu_custom_call.1} parent=1 // pred_fallthru
      _
    // Predicated region
    $region50: #{tpu_custom_call.1} parent=1 // pred_check
      _
    $region51: #{tpu_custom_call.1} parent=1 // pred_check_branch
      %155 = sbr.rel (0) target = $region53
    $region52: #{tpu_custom_call.1} parent=1 // pred_region
      %s157 = ssub.s32 16, 16
      %158 = vsyncadd [#allocation21], %s157
      %s160 = sshll.u32 [#allocation22], 4
      %s161 = int_to_ptr.vmem [resolvable:$true] %s160
      %163 = dma.hbm_to_vmem [thread:$0]  %s12, 16, %s161, [#allocation21]
    $region53: #{tpu_custom_call.1} parent=1 // pred_fallthru
      _
    // Predicated region
    $region54: #{tpu_custom_call.1} parent=1 // pred_check
      _
    $region55: #{tpu_custom_call.1} parent=1 // pred_check_branch
      %165 = sbr.rel (0) target = $region57
    $region56: #{tpu_custom_call.1} parent=1 // pred_region
      %166 = dma.done [#allocation3], 128
    $region57: #{tpu_custom_call.1} parent=1 // pred_fallthru
      _
    // Predicated region
    $region58: #{tpu_custom_call.1} parent=1 // pred_check
      _
    $region59: #{tpu_custom_call.1} parent=1 // pred_check_branch
      %168 = sbr.rel (0) target = $region61
    $region60: #{tpu_custom_call.1} parent=1 // pred_region
      %169 = dma.done [#allocation6], 2048
    $region61: #{tpu_custom_call.1} parent=1 // pred_fallthru
      _
    // Predicated region
    $region62: #{tpu_custom_call.1} parent=1 // pred_check
      _
    $region63: #{tpu_custom_call.1} parent=1 // pred_check_branch
      %171 = sbr.rel (0) target = $region65
    $region64: #{tpu_custom_call.1} parent=1 // pred_region
      %172 = dma.done [#allocation6], 2048
    $region65: #{tpu_custom_call.1} parent=1 // pred_fallthru
      _
    // Predicated region
    $region66: #{tpu_custom_call.1} parent=1 // pred_check
      _
    $region67: #{tpu_custom_call.1} parent=1 // pred_check_branch
      %174 = sbr.rel (0) target = $region69
    $region68: #{tpu_custom_call.1} parent=1 // pred_region
      %175 = dma.done [#allocation9], 16
    $region69: #{tpu_custom_call.1} parent=1 // pred_fallthru
      _
    // Predicated region
    $region70: #{tpu_custom_call.1} parent=1 // pred_check
      _
    $region71: #{tpu_custom_call.1} parent=1 // pred_check_branch
      %177 = sbr.rel (0) target = $region73
    $region72: #{tpu_custom_call.1} parent=1 // pred_region
      %178 = dma.done [#allocation9], 16
    $region73: #{tpu_custom_call.1} parent=1 // pred_fallthru
      _
    // Predicated region
    $region74: #{tpu_custom_call.1} parent=1 // pred_check
      _
    $region75: #{tpu_custom_call.1} parent=1 // pred_check_branch
      %180 = sbr.rel (0) target = $region77
    $region76: #{tpu_custom_call.1} parent=1 // pred_region
      %181 = dma.done [#allocation12], 16
    $region77: #{tpu_custom_call.1} parent=1 // pred_fallthru
      _
    // Predicated region
    $region78: #{tpu_custom_call.1} parent=1 // pred_check
      _
    $region79: #{tpu_custom_call.1} parent=1 // pred_check_branch
      %183 = sbr.rel (0) target = $region81
    $region80: #{tpu_custom_call.1} parent=1 // pred_region
      %184 = dma.done [#allocation12], 16
    $region81: #{tpu_custom_call.1} parent=1 // pred_fallthru
      _
    // Predicated region
    $region82: #{tpu_custom_call.1} parent=1 // pred_check
      _
    $region83: #{tpu_custom_call.1} parent=1 // pred_check_branch
      %186 = sbr.rel (0) target = $region85
    $region84: #{tpu_custom_call.1} parent=1 // pred_region
      %187 = dma.done [#allocation15], 2048
    $region85: #{tpu_custom_call.1} parent=1 // pred_fallthru
      _
    // Predicated region
    $region86: #{tpu_custom_call.1} parent=1 // pred_check
      _
    $region87: #{tpu_custom_call.1} parent=1 // pred_check_branch
      %189 = sbr.rel (0) target = $region89
    $region88: #{tpu_custom_call.1} parent=1 // pred_region
      %190 = dma.done [#allocation15], 2048
    $region89: #{tpu_custom_call.1} parent=1 // pred_fallthru
      _
    // Predicated region
    $region90: #{tpu_custom_call.1} parent=1 // pred_check
      _
    $region91: #{tpu_custom_call.1} parent=1 // pred_check_branch
      %192 = sbr.rel (0) target = $region93
    $region92: #{tpu_custom_call.1} parent=1 // pred_region
      %193 = dma.done [#allocation18], 16
    $region93: #{tpu_custom_call.1} parent=1 // pred_fallthru
      _
    // Predicated region
    $region94: #{tpu_custom_call.1} parent=1 // pred_check
      _
    $region95: #{tpu_custom_call.1} parent=1 // pred_check_branch
      %195 = sbr.rel (0) target = $region97
    $region96: #{tpu_custom_call.1} parent=1 // pred_region
      %196 = dma.done [#allocation18], 16
    $region97: #{tpu_custom_call.1} parent=1 // pred_fallthru
      _
    // Predicated region
    $region98: #{tpu_custom_call.1} parent=1 // pred_check
      _
    $region99: #{tpu_custom_call.1} parent=1 // pred_check_branch
      %198 = sbr.rel (0) target = $region101
    $region100: #{tpu_custom_call.1} parent=1 // pred_region
      %199 = dma.done [#allocation21], 16
    $region101: #{tpu_custom_call.1} parent=1 // pred_fallthru
      _
    // Predicated region
    $region102: #{tpu_custom_call.1} parent=1 // pred_check
      _
    $region103: #{tpu_custom_call.1} parent=1 // pred_check_branch
      %201 = sbr.rel (0) target = $region105
    $region104: #{tpu_custom_call.1} parent=1 // pred_region
      %202 = dma.done [#allocation21], 16
    $region105: #{tpu_custom_call.1} parent=1 // pred_fallthru
      _
    %v203 = vld [vmem:[#allocation2] sm:$0xff]
    %v204 = vmul.f32 %v203, 1.5707964
    %v205 = vand.u32 2147483647, %v204
    %vm206 = vcmp.le.f32.partialorder %v205, 0.7853982
    %vm207 = vcmp.lt.s32.totalorder %v204, 0
    %v208 = vand.u32 %v204, 2139095040
    %v209 = vshrl.u32 %v208, 23
    %v210 = vsub.s32 %v209, 127
    %v211 = vand.u32 2147483647, %v204
    %v212 = vand.u32 %v211, 8388607
    %v213 = vor.u32 %v212, 8388608
    %v214 = vsub.s32 0, %v213
    %v215 = vadd.s32 %v210, 1
    %vm216 = vcmp.gt.s32.totalorder %v215, 0
    %v217 = vsel %vm216, %v215, 0
    %v218 = vshrl.u32 %v217, 5
    %v219 = vand.u32 %v217, 31
    %v220 = vsub.s32 32, %v219
    %v221 = vshrl.u32 683565275, %v220
    %v222 = vshll.u32 683565275, %v219
    %v223 = vshrl.u32 2475754826, %v220
    %v224 = vor.u32 %v222, %v223
    %v225 = vshll.u32 2475754826, %v219
    %v226 = vshrl.u32 2131351028, %v220
    %v227 = vor.u32 %v225, %v226
    %v228 = vshll.u32 2131351028, %v219
    %v229 = vshrl.u32 2102212464, %v220
    %v230 = vor.u32 %v228, %v229
    %v231 = vshll.u32 2102212464, %v219
    %v232 = vshrl.u32 920167782, %v220
    %v233 = vor.u32 %v231, %v232
    %v234 = vshll.u32 920167782, %v219
    %v235 = vshrl.u32 1326507024, %v220
    %v236 = vor.u32 %v234, %v235
    %vm237 = vcmp.lt.s32.totalorder %v218, 1
    %vm238 = vcmp.lt.s32.totalorder %v218, 2
    %vm239 = vcmp.lt.s32.totalorder %v218, 3
    %vm240 = vcmp.lt.s32.totalorder %v218, 4
    %v241 = vsel %vm237, %v221, %v224
    %v242 = vsel %vm240, %v230, 2102212464
    %v243 = vsel %vm239, %v227, %v242
    %v244 = vsel %vm238, %v241, %v243
    %v245 = vsel %vm237, %v224, %v227
    %v246 = vsel %vm240, %v233, 920167782
    %v247 = vsel %vm239, %v230, %v246
    %v248 = vsel %vm238, %v245, %v247
    %v249 = vsel %vm237, %v227, %v230
    %v250 = vsel %vm240, %v236, 1326507024
    %v251 = vsel %vm239, %v233, %v250
    %v252 = vsel %vm238, %v249, %v251
    %v253 = vshll.u32 %v213, 8
    %v254 = vmul.u32.u64.compose %v253, %v252
    %v255 = vextract.low.u32 %v254
    %v256 = vextract.high.u32 %v254
    %v257 = vmul.u32.u64.compose %v253, %v248
    %v258 = vextract.low.u32 %v257
    %v259 = vextract.high.u32 %v257
    %v260 = vmul.u32 %v253, %v244
    %v261 = vadd.s32 %v256, %v258
    %vm262 = vc.u32 %v256, %v258
    %v263 = vadd.s32 %v259, 1
    %v264 = vsel %vm262, %v263, %v259
    %v265 = vadd.s32 %v260, %v264
    %v266 = vadd.s32 %v265, 536870912
    %v267 = vshrl.u32 %v266, 30
    %v268 = vshll.u32 %v267, 30
    %v269 = vsub.s32 %v265, %v268
    %vm270 = vcmp.lt.s32.totalorder %v269, 0
    %v271 = vsub.s32 0, %v269
    %v272 = vsel %vm270, %v271, %v269
    %v273 = vclz %v272
    %v274 = vsub.s32 %v273, 2
    %vm275 = vcmp.gt.s32.totalorder 0, %v274
    %v276 = vsel %vm275, 0, %v274
    %v277 = vsub.s32 32, %v276
    %v278 = vshll.u32 %v269, %v276
    %v279 = vshrl.u32 %v261, %v277
    %v280 = vor.u32 %v278, %v279
    %v281 = vsub.s32 4294967266, %v276
    %v282 = vadd.s32 %v281, 127
    %v283 = vshll.u32 %v282, 23
    %v284 = vor.u32 4788187, %v283
    %v285 = vand.u32 2147483647, %v284
    %v287 = vcvt.s32.f32 %v280
    %v288 = vmul.f32 %v287, %v285
    %v289 = vxor.u32 %v288, 2147483648
    %v290 = vsel %vm207, %v289, %v288
    %v291 = vsub.s32 4, %v267
    %v292 = vsel %vm207, %v291, %v267
    %v293 = vsel %vm206, %v204, %v290
    %v294 = vsel %vm206, 0, %v292
    %v295 = vcosq.f32.pop %v293
    %v296 = vsinq.f32.pop %v293
    %vm297 = vweird.f32 %v204
    %v298 = vand.u32 %v294, 3
    %vm299 = vcmp.lt.s32.totalorder %v298, 2
    %vm300 = vcmp.eq.s32.totalorder %v298, 0
    %v301 = vxor.u32 %v296, 2147483648
    %v302 = vsel %vm300, %v295, %v301
    %vm303 = vcmp.eq.s32.totalorder %v298, 2
    %v304 = vxor.u32 %v295, 2147483648
    %v305 = vsel %vm303, %v304, %v296
    %v306 = vsel %vm299, %v302, %v305
    %v307 = vsel %vm297, nan, %v306
    %v308 = vand.u32 2147483647, %v204
    %vm309 = vcmp.le.f32.partialorder %v308, 0.7853982
    %vm310 = vcmp.lt.s32.totalorder %v204, 0
    %v311 = vand.u32 %v204, 2139095040
    %v312 = vshrl.u32 %v311, 23
    %v313 = vsub.s32 %v312, 127
    %v314 = vand.u32 2147483647, %v204
    %v315 = vand.u32 %v314, 8388607
    %v316 = vor.u32 %v315, 8388608
    %v317 = vsub.s32 0, %v316
    %v318 = vadd.s32 %v313, 1
    %vm319 = vcmp.gt.s32.totalorder %v318, 0
    %v320 = vsel %vm319, %v318, 0
    %v321 = vshrl.u32 %v320, 5
    %v322 = vand.u32 %v320, 31
    %v323 = vsub.s32 32, %v322
    %v324 = vshrl.u32 683565275, %v323
    %v325 = vshll.u32 683565275, %v322
    %v326 = vshrl.u32 2475754826, %v323
    %v327 = vor.u32 %v325, %v326
    %v328 = vshll.u32 2475754826, %v322
    %v329 = vshrl.u32 2131351028, %v323
    %v330 = vor.u32 %v328, %v329
    %v331 = vshll.u32 2131351028, %v322
    %v332 = vshrl.u32 2102212464, %v323
    %v333 = vor.u32 %v331, %v332
    %v334 = vshll.u32 2102212464, %v322
    %v335 = vshrl.u32 920167782, %v323
    %v336 = vor.u32 %v334, %v335
    %v337 = vshll.u32 920167782, %v322
    %v338 = vshrl.u32 1326507024, %v323
    %v339 = vor.u32 %v337, %v338
    %vm340 = vcmp.lt.s32.totalorder %v321, 1
    %vm341 = vcmp.lt.s32.totalorder %v321, 2
    %vm342 = vcmp.lt.s32.totalorder %v321, 3
    %vm343 = vcmp.lt.s32.totalorder %v321, 4
    %v344 = vsel %vm340, %v324, %v327
    %v345 = vsel %vm343, %v333, 2102212464
    %v346 = vsel %vm342, %v330, %v345
    %v347 = vsel %vm341, %v344, %v346
    %v348 = vsel %vm340, %v327, %v330
    %v349 = vsel %vm343, %v336, 920167782
    %v350 = vsel %vm342, %v333, %v349
    %v351 = vsel %vm341, %v348, %v350
    %v352 = vsel %vm340, %v330, %v333
    %v353 = vsel %vm343, %v339, 1326507024
    %v354 = vsel %vm342, %v336, %v353
    %v355 = vsel %vm341, %v352, %v354
    %v356 = vshll.u32 %v316, 8
    %v357 = vmul.u32.u64.compose %v356, %v355
    %v358 = vextract.low.u32 %v357
    %v359 = vextract.high.u32 %v357
    %v360 = vmul.u32.u64.compose %v356, %v351
    %v361 = vextract.low.u32 %v360
    %v362 = vextract.high.u32 %v360
    %v363 = vmul.u32 %v356, %v347
    %v364 = vadd.s32 %v359, %v361
    %vm365 = vc.u32 %v359, %v361
    %v366 = vadd.s32 %v362, 1
    %v367 = vsel %vm365, %v366, %v362
    %v368 = vadd.s32 %v363, %v367
    %v369 = vadd.s32 %v368, 536870912
    %v370 = vshrl.u32 %v369, 30
    %v371 = vshll.u32 %v370, 30
    %v372 = vsub.s32 %v368, %v371
    %vm373 = vcmp.lt.s32.totalorder %v372, 0
    %v374 = vsub.s32 0, %v372
    %v375 = vsel %vm373, %v374, %v372
    %v376 = vclz %v375
    %v377 = vsub.s32 %v376, 2
    %vm378 = vcmp.gt.s32.totalorder 0, %v377
    %v379 = vsel %vm378, 0, %v377
    %v380 = vsub.s32 32, %v379
    %v381 = vshll.u32 %v372, %v379
    %v382 = vshrl.u32 %v364, %v380
    %v383 = vor.u32 %v381, %v382
    %v384 = vsub.s32 4294967266, %v379
    %v385 = vadd.s32 %v384, 127
    %v386 = vshll.u32 %v385, 23
    %v387 = vor.u32 4788187, %v386
    %v388 = vand.u32 2147483647, %v387
    %v390 = vcvt.s32.f32 %v383
    %v391 = vmul.f32 %v390, %v388
    %v392 = vxor.u32 %v391, 2147483648
    %v393 = vsel %vm310, %v392, %v391
    %v394 = vsub.s32 4, %v370
    %v395 = vsel %vm310, %v394, %v370
    %v396 = vsel %vm309, %v204, %v393
    %v397 = vsel %vm309, 0, %v395
    %v398 = vcosq.f32.pop %v396
    %v399 = vsinq.f32.pop %v396
    %vm400 = vweird.f32 %v204
    %v401 = vadd.s32 %v397, 3
    %v402 = vand.u32 %v401, 3
    %vm403 = vcmp.lt.s32.totalorder %v402, 2
    %vm404 = vcmp.eq.s32.totalorder %v402, 0
    %v405 = vxor.u32 %v399, 2147483648
    %v406 = vsel %vm404, %v398, %v405
    %vm407 = vcmp.eq.s32.totalorder %v402, 2
    %v408 = vxor.u32 %v398, 2147483648
    %v409 = vsel %vm407, %v408, %v399
    %v410 = vsel %vm403, %v406, %v409
    %v411 = vsel %vm400, nan, %v410
    %v412 = vld [vmem:[#allocation5] sm:$0xff]
    %v413 = vld [vmem:[#allocation5 + $0x8] sm:$0xff]
    %v414 = vld [vmem:[#allocation5 + $0x10] sm:$0xff]
    %v415 = vld [vmem:[#allocation5 + $0x18] sm:$0xff]
    %v416 = vld [vmem:[#allocation5 + $0x20] sm:$0xff]
    %v417 = vld [vmem:[#allocation5 + $0x28] sm:$0xff]
    %v418 = vld [vmem:[#allocation5 + $0x30] sm:$0xff]
    %v419 = vld [vmem:[#allocation5 + $0x38] sm:$0xff]
    %v420 = vld [vmem:[#allocation5 + $0x40] sm:$0xff]
    %v421 = vld [vmem:[#allocation5 + $0x48] sm:$0xff]
    %v422 = vld [vmem:[#allocation5 + $0x50] sm:$0xff]
    %v423 = vld [vmem:[#allocation5 + $0x58] sm:$0xff]
    %v424 = vld [vmem:[#allocation5 + $0x60] sm:$0xff]
    %v425 = vld [vmem:[#allocation5 + $0x68] sm:$0xff]
    %v426 = vld [vmem:[#allocation5 + $0x70] sm:$0xff]
    %v427 = vld [vmem:[#allocation5 + $0x78] sm:$0xff]
    %v428 = vld [vmem:[#allocation7] sm:$0xff]
    %v429 = vld [vmem:[#allocation7 + $0x8] sm:$0xff]
    %v430 = vld [vmem:[#allocation7 + $0x10] sm:$0xff]
    %v431 = vld [vmem:[#allocation7 + $0x18] sm:$0xff]
    %v432 = vld [vmem:[#allocation7 + $0x20] sm:$0xff]
    %v433 = vld [vmem:[#allocation7 + $0x28] sm:$0xff]
    %v434 = vld [vmem:[#allocation7 + $0x30] sm:$0xff]
    %v435 = vld [vmem:[#allocation7 + $0x38] sm:$0xff]
    %v436 = vld [vmem:[#allocation7 + $0x40] sm:$0xff]
    %v437 = vld [vmem:[#allocation7 + $0x48] sm:$0xff]
    %v438 = vld [vmem:[#allocation7 + $0x50] sm:$0xff]
    %v439 = vld [vmem:[#allocation7 + $0x58] sm:$0xff]
    %v440 = vld [vmem:[#allocation7 + $0x60] sm:$0xff]
    %v441 = vld [vmem:[#allocation7 + $0x68] sm:$0xff]
    %v442 = vld [vmem:[#allocation7 + $0x70] sm:$0xff]
    %v443 = vld [vmem:[#allocation7 + $0x78] sm:$0xff]
    %444 = vmatprep.subr.mxu0 0.0
    %445 = vmatpush1.msra.mxu0 %v412
    %446 = vmatprep.subr.mxu0 0.0
    %447 = vmatpush1.msra.mxu0 %v413
    %448 = vmatprep.subr.mxu0 0.0
    %449 = vmatpush1.msra.mxu0 %v414
    %450 = vmatprep.subr.mxu0 0.0
    %451 = vmatpush1.msra.mxu0 %v415
    %452 = vmatprep.subr.mxu0 0.0
    %453 = vmatpush1.msra.mxu0 %v416
    %454 = vmatprep.subr.mxu0 0.0
    %455 = vmatpush1.msra.mxu0 %v417
    %456 = vmatprep.subr.mxu0 0.0
    %457 = vmatpush1.msra.mxu0 %v418
    %458 = vmatprep.subr.mxu0 0.0
    %459 = vmatpush1.msra.mxu0 %v419
    %460 = vmatprep.subr.mxu0 0.0
    %461 = vmatpush1.msra.mxu0 %v420
    %462 = vmatprep.subr.mxu0 0.0
    %463 = vmatpush1.msra.mxu0 %v421
    %464 = vmatprep.subr.mxu0 0.0
    %465 = vmatpush1.msra.mxu0 %v422
    %466 = vmatprep.subr.mxu0 0.0
    %467 = vmatpush1.msra.mxu0 %v423
    %468 = vmatprep.subr.mxu0 0.0
    %469 = vmatpush1.msra.mxu0 %v424
    %470 = vmatprep.subr.mxu0 0.0
    %471 = vmatpush1.msra.mxu0 %v425
    %472 = vmatprep.subr.mxu0 0.0
    %473 = vmatpush1.msra.mxu0 %v426
    %474 = vmatprep.subr.mxu0 0.0
    %475 = vmatpush1.msra.mxu0 %v427
    %476 = vmatprep.subr.mxu0 0.0
    %477 = vmatpush1.msra.mxu0 0.0
    %478 = vmatprep.subr.mxu0 0.0
    %479 = vmatpush1.msra.mxu0 0.0
    %480 = vmatprep.subr.mxu0 0.0
    %481 = vmatpush1.msra.mxu0 0.0
    %482 = vmatprep.subr.mxu0 0.0
    %483 = vmatpush1.msra.mxu0 0.0
    %484 = vmatprep.subr.mxu0 0.0
    %485 = vmatpush1.msra.mxu0 0.0
    %486 = vmatprep.subr.mxu0 0.0
    %487 = vmatpush1.msra.mxu0 0.0
    %488 = vmatprep.subr.mxu0 0.0
    %489 = vmatpush1.msra.mxu0 0.0
    %490 = vmatprep.subr.mxu0 0.0
    %491 = vmatpush1.msra.mxu0 0.0
    %492 = vmatprep.subr.mxu0 0.0
    %493 = vmatpush1.msra.mxu0 0.0
    %494 = vmatprep.subr.mxu0 0.0
    %495 = vmatpush1.msra.mxu0 0.0
    %496 = vmatprep.subr.mxu0 0.0
    %497 = vmatpush1.msra.mxu0 0.0
    %498 = vmatprep.subr.mxu0 0.0
    %499 = vmatpush1.msra.mxu0 0.0
    %500 = vmatprep.subr.mxu0 0.0
    %501 = vmatpush1.msra.mxu0 0.0
    %502 = vmatprep.subr.mxu0 0.0
    %503 = vmatpush1.msra.mxu0 0.0
    %504 = vmatprep.subr.mxu0 0.0
    %505 = vmatpush1.msra.mxu0 0.0
    %506 = vmatprep.subr.mxu0 0.0
    %507 = vmatpush1.msra.mxu0 0.0
    %508 = vmatprep.mubr.f32.mxu0 0.0
    %509 = vmatmul.mubr.f32.gmra.mrb[0].mxu0 %v307
    %v510 = vpop.f32.mrb[0].mxu0
    %v511 = vadd.f32 0.0, %v510
    %v512 = vpop.f32.mrb[0].mxu0
    %513 = vdwg.mxu0
    %514 = vmatprep.subr.mxu0 0.0
    %515 = vmatpush1.msra.mxu0 %v428
    %516 = vmatprep.subr.mxu0 0.0
    %517 = vmatpush1.msra.mxu0 %v429
    %518 = vmatprep.subr.mxu0 0.0
    %519 = vmatpush1.msra.mxu0 %v430
    %520 = vmatprep.subr.mxu0 0.0
    %521 = vmatpush1.msra.mxu0 %v431
    %522 = vmatprep.subr.mxu0 0.0
    %523 = vmatpush1.msra.mxu0 %v432
    %524 = vmatprep.subr.mxu0 0.0
    %525 = vmatpush1.msra.mxu0 %v433
    %526 = vmatprep.subr.mxu0 0.0
    %527 = vmatpush1.msra.mxu0 %v434
    %528 = vmatprep.subr.mxu0 0.0
    %529 = vmatpush1.msra.mxu0 %v435
    %530 = vmatprep.subr.mxu0 0.0
    %531 = vmatpush1.msra.mxu0 %v436
    %532 = vmatprep.subr.mxu0 0.0
    %533 = vmatpush1.msra.mxu0 %v437
    %534 = vmatprep.subr.mxu0 0.0
    %535 = vmatpush1.msra.mxu0 %v438
    %536 = vmatprep.subr.mxu0 0.0
    %537 = vmatpush1.msra.mxu0 %v439
    %538 = vmatprep.subr.mxu0 0.0
    %539 = vmatpush1.msra.mxu0 %v440
    %540 = vmatprep.subr.mxu0 0.0
    %541 = vmatpush1.msra.mxu0 %v441
    %542 = vmatprep.subr.mxu0 0.0
    %543 = vmatpush1.msra.mxu0 %v442
    %544 = vmatprep.subr.mxu0 0.0
    %545 = vmatpush1.msra.mxu0 %v443
    %546 = vmatprep.subr.mxu0 0.0
    %547 = vmatpush1.msra.mxu0 0.0
    %548 = vmatprep.subr.mxu0 0.0
    %549 = vmatpush1.msra.mxu0 0.0
    %550 = vmatprep.subr.mxu0 0.0
    %551 = vmatpush1.msra.mxu0 0.0
    %552 = vmatprep.subr.mxu0 0.0
    %553 = vmatpush1.msra.mxu0 0.0
    %554 = vmatprep.subr.mxu0 0.0
    %555 = vmatpush1.msra.mxu0 0.0
    %556 = vmatprep.subr.mxu0 0.0
    %557 = vmatpush1.msra.mxu0 0.0
    %558 = vmatprep.subr.mxu0 0.0
    %559 = vmatpush1.msra.mxu0 0.0
    %560 = vmatprep.subr.mxu0 0.0
    %561 = vmatpush1.msra.mxu0 0.0
    %562 = vmatprep.subr.mxu0 0.0
    %563 = vmatpush1.msra.mxu0 0.0
    %564 = vmatprep.subr.mxu0 0.0
    %565 = vmatpush1.msra.mxu0 0.0
    %566 = vmatprep.subr.mxu0 0.0
    %567 = vmatpush1.msra.mxu0 0.0
    %568 = vmatprep.subr.mxu0 0.0
    %569 = vmatpush1.msra.mxu0 0.0
    %570 = vmatprep.subr.mxu0 0.0
    %571 = vmatpush1.msra.mxu0 0.0
    %572 = vmatprep.subr.mxu0 0.0
    %573 = vmatpush1.msra.mxu0 0.0
    %574 = vmatprep.subr.mxu0 0.0
    %575 = vmatpush1.msra.mxu0 0.0
    %576 = vmatprep.subr.mxu0 0.0
    %577 = vmatpush1.msra.mxu0 0.0
    %578 = vmatprep.mubr.f32.mxu0 0.0
    %579 = vmatmul.mubr.f32.gmra.mrb[0].mxu0 %v411
    %v580 = vpop.f32.mrb[0].mxu0
    %v581 = vadd.f32 0.0, %v580
    %v582 = vpop.f32.mrb[0].mxu0
    %583 = vdwg.mxu0
    %v584 = vsub.f32 %v511, %v581
    %v585 = vld [vmem:[#allocation8] sm:$0x1]
    %v587 = vlaneseq
    %v588 = vshrl.u32 %v587, 7
    %v589 = vsub.s32 0, %v588
    %v590 = vrot.slane %v585, %v589
    %v592 = vadd.f32 %v584, %v590
    %593 = vmatprep.subr.mxu0 0.0
    %594 = vmatpush1.msra.mxu0 %v428
    %595 = vmatprep.subr.mxu0 0.0
    %596 = vmatpush1.msra.mxu0 %v429
    %597 = vmatprep.subr.mxu0 0.0
    %598 = vmatpush1.msra.mxu0 %v430
    %599 = vmatprep.subr.mxu0 0.0
    %600 = vmatpush1.msra.mxu0 %v431
    %601 = vmatprep.subr.mxu0 0.0
    %602 = vmatpush1.msra.mxu0 %v432
    %603 = vmatprep.subr.mxu0 0.0
    %604 = vmatpush1.msra.mxu0 %v433
    %605 = vmatprep.subr.mxu0 0.0
    %606 = vmatpush1.msra.mxu0 %v434
    %607 = vmatprep.subr.mxu0 0.0
    %608 = vmatpush1.msra.mxu0 %v435
    %609 = vmatprep.subr.mxu0 0.0
    %610 = vmatpush1.msra.mxu0 %v436
    %611 = vmatprep.subr.mxu0 0.0
    %612 = vmatpush1.msra.mxu0 %v437
    %613 = vmatprep.subr.mxu0 0.0
    %614 = vmatpush1.msra.mxu0 %v438
    %615 = vmatprep.subr.mxu0 0.0
    %616 = vmatpush1.msra.mxu0 %v439
    %617 = vmatprep.subr.mxu0 0.0
    %618 = vmatpush1.msra.mxu0 %v440
    %619 = vmatprep.subr.mxu0 0.0
    %620 = vmatpush1.msra.mxu0 %v441
    %621 = vmatprep.subr.mxu0 0.0
    %622 = vmatpush1.msra.mxu0 %v442
    %623 = vmatprep.subr.mxu0 0.0
    %624 = vmatpush1.msra.mxu0 %v443
    %625 = vmatprep.subr.mxu0 0.0
    %626 = vmatpush1.msra.mxu0 0.0
    %627 = vmatprep.subr.mxu0 0.0
    %628 = vmatpush1.msra.mxu0 0.0
    %629 = vmatprep.subr.mxu0 0.0
    %630 = vmatpush1.msra.mxu0 0.0
    %631 = vmatprep.subr.mxu0 0.0
    %632 = vmatpush1.msra.mxu0 0.0
    %633 = vmatprep.subr.mxu0 0.0
    %634 = vmatpush1.msra.mxu0 0.0
    %635 = vmatprep.subr.mxu0 0.0
    %636 = vmatpush1.msra.mxu0 0.0
    %637 = vmatprep.subr.mxu0 0.0
    %638 = vmatpush1.msra.mxu0 0.0
    %639 = vmatprep.subr.mxu0 0.0
    %640 = vmatpush1.msra.mxu0 0.0
    %641 = vmatprep.subr.mxu0 0.0
    %642 = vmatpush1.msra.mxu0 0.0
    %643 = vmatprep.subr.mxu0 0.0
    %644 = vmatpush1.msra.mxu0 0.0
    %645 = vmatprep.subr.mxu0 0.0
    %646 = vmatpush1.msra.mxu0 0.0
    %647 = vmatprep.subr.mxu0 0.0
    %648 = vmatpush1.msra.mxu0 0.0
    %649 = vmatprep.subr.mxu0 0.0
    %650 = vmatpush1.msra.mxu0 0.0
    %651 = vmatprep.subr.mxu0 0.0
    %652 = vmatpush1.msra.mxu0 0.0
    %653 = vmatprep.subr.mxu0 0.0
    %654 = vmatpush1.msra.mxu0 0.0
    %655 = vmatprep.subr.mxu0 0.0
    %656 = vmatpush1.msra.mxu0 0.0
    %657 = vmatprep.mubr.f32.mxu0 0.0
    %658 = vmatmul.mubr.f32.gmra.mrb[0].mxu0 %v307
    %v659 = vpop.f32.mrb[0].mxu0
    %v660 = vadd.f32 0.0, %v659
    %v661 = vpop.f32.mrb[0].mxu0
    %662 = vdwg.mxu0
    %663 = vmatprep.subr.mxu0 0.0
    %664 = vmatpush1.msra.mxu0 %v412
    %665 = vmatprep.subr.mxu0 0.0
    %666 = vmatpush1.msra.mxu0 %v413
    %667 = vmatprep.subr.mxu0 0.0
    %668 = vmatpush1.msra.mxu0 %v414
    %669 = vmatprep.subr.mxu0 0.0
    %670 = vmatpush1.msra.mxu0 %v415
    %671 = vmatprep.subr.mxu0 0.0
    %672 = vmatpush1.msra.mxu0 %v416
    %673 = vmatprep.subr.mxu0 0.0
    %674 = vmatpush1.msra.mxu0 %v417
    %675 = vmatprep.subr.mxu0 0.0
    %676 = vmatpush1.msra.mxu0 %v418
    %677 = vmatprep.subr.mxu0 0.0
    %678 = vmatpush1.msra.mxu0 %v419
    %679 = vmatprep.subr.mxu0 0.0
    %680 = vmatpush1.msra.mxu0 %v420
    %681 = vmatprep.subr.mxu0 0.0
    %682 = vmatpush1.msra.mxu0 %v421
    %683 = vmatprep.subr.mxu0 0.0
    %684 = vmatpush1.msra.mxu0 %v422
    %685 = vmatprep.subr.mxu0 0.0
    %686 = vmatpush1.msra.mxu0 %v423
    %687 = vmatprep.subr.mxu0 0.0
    %688 = vmatpush1.msra.mxu0 %v424
    %689 = vmatprep.subr.mxu0 0.0
    %690 = vmatpush1.msra.mxu0 %v425
    %691 = vmatprep.subr.mxu0 0.0
    %692 = vmatpush1.msra.mxu0 %v426
    %693 = vmatprep.subr.mxu0 0.0
    %694 = vmatpush1.msra.mxu0 %v427
    %695 = vmatprep.subr.mxu0 0.0
    %696 = vmatpush1.msra.mxu0 0.0
    %697 = vmatprep.subr.mxu0 0.0
    %698 = vmatpush1.msra.mxu0 0.0
    %699 = vmatprep.subr.mxu0 0.0
    %700 = vmatpush1.msra.mxu0 0.0
    %701 = vmatprep.subr.mxu0 0.0
    %702 = vmatpush1.msra.mxu0 0.0
    %703 = vmatprep.subr.mxu0 0.0
    %704 = vmatpush1.msra.mxu0 0.0
    %705 = vmatprep.subr.mxu0 0.0
    %706 = vmatpush1.msra.mxu0 0.0
    %707 = vmatprep.subr.mxu0 0.0
    %708 = vmatpush1.msra.mxu0 0.0
    %709 = vmatprep.subr.mxu0 0.0
    %710 = vmatpush1.msra.mxu0 0.0
    %711 = vmatprep.subr.mxu0 0.0
    %712 = vmatpush1.msra.mxu0 0.0
    %713 = vmatprep.subr.mxu0 0.0
    %714 = vmatpush1.msra.mxu0 0.0
    %715 = vmatprep.subr.mxu0 0.0
    %716 = vmatpush1.msra.mxu0 0.0
    %717 = vmatprep.subr.mxu0 0.0
    %718 = vmatpush1.msra.mxu0 0.0
    %719 = vmatprep.subr.mxu0 0.0
    %720 = vmatpush1.msra.mxu0 0.0
    %721 = vmatprep.subr.mxu0 0.0
    %722 = vmatpush1.msra.mxu0 0.0
    %723 = vmatprep.subr.mxu0 0.0
    %724 = vmatpush1.msra.mxu0 0.0
    %725 = vmatprep.subr.mxu0 0.0
    %726 = vmatpush1.msra.mxu0 0.0
    %727 = vmatprep.mubr.f32.mxu0 0.0
    %728 = vmatmul.mubr.f32.gmra.mrb[0].mxu0 %v411
    %v729 = vpop.f32.mrb[0].mxu0
    %v730 = vadd.f32 %v660, %v729
    %v731 = vpop.f32.mrb[0].mxu0
    %732 = vdwg.mxu0
    %v733 = vld [vmem:[#allocation10] sm:$0x1]
    %v735 = vlaneseq
    %v736 = vshrl.u32 %v735, 7
    %v737 = vsub.s32 0, %v736
    %v738 = vrot.slane %v733, %v737
    %v740 = vadd.f32 %v730, %v738
    %v741 = vmul.f32 %v592, %v592
    %v742 = vmul.f32 %v740, %v740
    %v743 = vadd.f32 %v741, %v742
    %v744 = vmax.f32 %v743, 1e-30
    %v745 = vrsqrt.pop %v744
    %v746 = vmul.f32 %v744, %v745
    %vm747 = vcmp.eq.f32.partialorder %v744, inf
    %v748 = vsel %vm747, %v744, %v746
    %vm749 = vcmp.eq.f32.partialorder %v744, 0.0
    %v750 = vand.u32 %v744, 2147483648
    %v751 = vsel %vm749, %v750, %v748
    %v752 = vrcp.pop %v751
    %v753 = vmul.f32 1.0, %v752
    %v754 = vld [vmem:[#allocation11] sm:$0x1]
    %v755 = vld [vmem:[#allocation13] sm:$0x1]
    %v757 = vlaneseq
    %v758 = vshrl.u32 %v757, 7
    %v759 = vsub.s32 0, %v758
    %v760 = vrot.slane %v754, %v759
    %v762 = vmul.f32 %v760, %v592
    %v764 = vlaneseq
    %v765 = vshrl.u32 %v764, 7
    %v766 = vsub.s32 0, %v765
    %v767 = vrot.slane %v755, %v766
    %v769 = vmul.f32 %v767, %v740
    %v770 = vadd.f32 %v762, %v769
    %v771 = vmul.f32 %v770, %v753
    %v772 = vmul.f32 %v767, %v592
    %v773 = vmul.f32 %v760, %v740
    %v774 = vsub.f32 %v772, %v773
    %v775 = vmul.f32 %v774, %v753
    %v776 = vld [vmem:[#allocation14] sm:$0xff]
    %v777 = vld [vmem:[#allocation14 + $0x8] sm:$0xff]
    %v778 = vld [vmem:[#allocation14 + $0x10] sm:$0xff]
    %v779 = vld [vmem:[#allocation14 + $0x18] sm:$0xff]
    %v780 = vld [vmem:[#allocation14 + $0x20] sm:$0xff]
    %v781 = vld [vmem:[#allocation14 + $0x28] sm:$0xff]
    %v782 = vld [vmem:[#allocation14 + $0x30] sm:$0xff]
    %v783 = vld [vmem:[#allocation14 + $0x38] sm:$0xff]
    %v784 = vld [vmem:[#allocation14 + $0x40] sm:$0xff]
    %v785 = vld [vmem:[#allocation14 + $0x48] sm:$0xff]
    %v786 = vld [vmem:[#allocation14 + $0x50] sm:$0xff]
    %v787 = vld [vmem:[#allocation14 + $0x58] sm:$0xff]
    %v788 = vld [vmem:[#allocation14 + $0x60] sm:$0xff]
    %v789 = vld [vmem:[#allocation14 + $0x68] sm:$0xff]
    %v790 = vld [vmem:[#allocation14 + $0x70] sm:$0xff]
    %v791 = vld [vmem:[#allocation14 + $0x78] sm:$0xff]
    %v792 = vld [vmem:[#allocation16] sm:$0xff]
    %v793 = vld [vmem:[#allocation16 + $0x8] sm:$0xff]
    %v794 = vld [vmem:[#allocation16 + $0x10] sm:$0xff]
    %v795 = vld [vmem:[#allocation16 + $0x18] sm:$0xff]
    %v796 = vld [vmem:[#allocation16 + $0x20] sm:$0xff]
    %v797 = vld [vmem:[#allocation16 + $0x28] sm:$0xff]
    %v798 = vld [vmem:[#allocation16 + $0x30] sm:$0xff]
    %v799 = vld [vmem:[#allocation16 + $0x38] sm:$0xff]
    %v800 = vld [vmem:[#allocation16 + $0x40] sm:$0xff]
    %v801 = vld [vmem:[#allocation16 + $0x48] sm:$0xff]
    %v802 = vld [vmem:[#allocation16 + $0x50] sm:$0xff]
    %v803 = vld [vmem:[#allocation16 + $0x58] sm:$0xff]
    %v804 = vld [vmem:[#allocation16 + $0x60] sm:$0xff]
    %v805 = vld [vmem:[#allocation16 + $0x68] sm:$0xff]
    %v806 = vld [vmem:[#allocation16 + $0x70] sm:$0xff]
    %v807 = vld [vmem:[#allocation16 + $0x78] sm:$0xff]
    %808 = vmatprep.subr.mxu0 0.0
    %809 = vmatpush1.msra.mxu0 %v776
    %810 = vmatprep.subr.mxu0 0.0
    %811 = vmatpush1.msra.mxu0 %v777
    %812 = vmatprep.subr.mxu0 0.0
    %813 = vmatpush1.msra.mxu0 %v778
    %814 = vmatprep.subr.mxu0 0.0
    %815 = vmatpush1.msra.mxu0 %v779
    %816 = vmatprep.subr.mxu0 0.0
    %817 = vmatpush1.msra.mxu0 %v780
    %818 = vmatprep.subr.mxu0 0.0
    %819 = vmatpush1.msra.mxu0 %v781
    %820 = vmatprep.subr.mxu0 0.0
    %821 = vmatpush1.msra.mxu0 %v782
    %822 = vmatprep.subr.mxu0 0.0
    %823 = vmatpush1.msra.mxu0 %v783
    %824 = vmatprep.subr.mxu0 0.0
    %825 = vmatpush1.msra.mxu0 %v784
    %826 = vmatprep.subr.mxu0 0.0
    %827 = vmatpush1.msra.mxu0 %v785
    %828 = vmatprep.subr.mxu0 0.0
    %829 = vmatpush1.msra.mxu0 %v786
    %830 = vmatprep.subr.mxu0 0.0
    %831 = vmatpush1.msra.mxu0 %v787
    %832 = vmatprep.subr.mxu0 0.0
    %833 = vmatpush1.msra.mxu0 %v788
    %834 = vmatprep.subr.mxu0 0.0
    %835 = vmatpush1.msra.mxu0 %v789
    %836 = vmatprep.subr.mxu0 0.0
    %837 = vmatpush1.msra.mxu0 %v790
    %838 = vmatprep.subr.mxu0 0.0
    %839 = vmatpush1.msra.mxu0 %v791
    %840 = vmatprep.subr.mxu0 0.0
    %841 = vmatpush1.msra.mxu0 0.0
    %842 = vmatprep.subr.mxu0 0.0
    %843 = vmatpush1.msra.mxu0 0.0
    %844 = vmatprep.subr.mxu0 0.0
    %845 = vmatpush1.msra.mxu0 0.0
    %846 = vmatprep.subr.mxu0 0.0
    %847 = vmatpush1.msra.mxu0 0.0
    %848 = vmatprep.subr.mxu0 0.0
    %849 = vmatpush1.msra.mxu0 0.0
    %850 = vmatprep.subr.mxu0 0.0
    %851 = vmatpush1.msra.mxu0 0.0
    %852 = vmatprep.subr.mxu0 0.0
    %853 = vmatpush1.msra.mxu0 0.0
    %854 = vmatprep.subr.mxu0 0.0
    %855 = vmatpush1.msra.mxu0 0.0
    %856 = vmatprep.subr.mxu0 0.0
    %857 = vmatpush1.msra.mxu0 0.0
    %858 = vmatprep.subr.mxu0 0.0
    %859 = vmatpush1.msra.mxu0 0.0
    %860 = vmatprep.subr.mxu0 0.0
    %861 = vmatpush1.msra.mxu0 0.0
    %862 = vmatprep.subr.mxu0 0.0
    %863 = vmatpush1.msra.mxu0 0.0
    %864 = vmatprep.subr.mxu0 0.0
    %865 = vmatpush1.msra.mxu0 0.0
    %866 = vmatprep.subr.mxu0 0.0
    %867 = vmatpush1.msra.mxu0 0.0
    %868 = vmatprep.subr.mxu0 0.0
    %869 = vmatpush1.msra.mxu0 0.0
    %870 = vmatprep.subr.mxu0 0.0
    %871 = vmatpush1.msra.mxu0 0.0
    %872 = vmatprep.mubr.f32.mxu0 0.0
    %873 = vmatmul.mubr.f32.gmra.mrb[0].mxu0 %v771
    %v874 = vpop.f32.mrb[0].mxu0
    %v875 = vadd.f32 0.0, %v874
    %v876 = vpop.f32.mrb[0].mxu0
    %877 = vdwg.mxu0
    %878 = vmatprep.subr.mxu0 0.0
    %879 = vmatpush1.msra.mxu0 %v792
    %880 = vmatprep.subr.mxu0 0.0
    %881 = vmatpush1.msra.mxu0 %v793
    %882 = vmatprep.subr.mxu0 0.0
    %883 = vmatpush1.msra.mxu0 %v794
    %884 = vmatprep.subr.mxu0 0.0
    %885 = vmatpush1.msra.mxu0 %v795
    %886 = vmatprep.subr.mxu0 0.0
    %887 = vmatpush1.msra.mxu0 %v796
    %888 = vmatprep.subr.mxu0 0.0
    %889 = vmatpush1.msra.mxu0 %v797
    %890 = vmatprep.subr.mxu0 0.0
    %891 = vmatpush1.msra.mxu0 %v798
    %892 = vmatprep.subr.mxu0 0.0
    %893 = vmatpush1.msra.mxu0 %v799
    %894 = vmatprep.subr.mxu0 0.0
    %895 = vmatpush1.msra.mxu0 %v800
    %896 = vmatprep.subr.mxu0 0.0
    %897 = vmatpush1.msra.mxu0 %v801
    %898 = vmatprep.subr.mxu0 0.0
    %899 = vmatpush1.msra.mxu0 %v802
    %900 = vmatprep.subr.mxu0 0.0
    %901 = vmatpush1.msra.mxu0 %v803
    %902 = vmatprep.subr.mxu0 0.0
    %903 = vmatpush1.msra.mxu0 %v804
    %904 = vmatprep.subr.mxu0 0.0
    %905 = vmatpush1.msra.mxu0 %v805
    %906 = vmatprep.subr.mxu0 0.0
    %907 = vmatpush1.msra.mxu0 %v806
    %908 = vmatprep.subr.mxu0 0.0
    %909 = vmatpush1.msra.mxu0 %v807
    %910 = vmatprep.subr.mxu0 0.0
    %911 = vmatpush1.msra.mxu0 0.0
    %912 = vmatprep.subr.mxu0 0.0
    %913 = vmatpush1.msra.mxu0 0.0
    %914 = vmatprep.subr.mxu0 0.0
    %915 = vmatpush1.msra.mxu0 0.0
    %916 = vmatprep.subr.mxu0 0.0
    %917 = vmatpush1.msra.mxu0 0.0
    %918 = vmatprep.subr.mxu0 0.0
    %919 = vmatpush1.msra.mxu0 0.0
    %920 = vmatprep.subr.mxu0 0.0
    %921 = vmatpush1.msra.mxu0 0.0
    %922 = vmatprep.subr.mxu0 0.0
    %923 = vmatpush1.msra.mxu0 0.0
    %924 = vmatprep.subr.mxu0 0.0
    %925 = vmatpush1.msra.mxu0 0.0
    %926 = vmatprep.subr.mxu0 0.0
    %927 = vmatpush1.msra.mxu0 0.0
    %928 = vmatprep.subr.mxu0 0.0
    %929 = vmatpush1.msra.mxu0 0.0
    %930 = vmatprep.subr.mxu0 0.0
    %931 = vmatpush1.msra.mxu0 0.0
    %932 = vmatprep.subr.mxu0 0.0
    %933 = vmatpush1.msra.mxu0 0.0
    %934 = vmatprep.subr.mxu0 0.0
    %935 = vmatpush1.msra.mxu0 0.0
    %936 = vmatprep.subr.mxu0 0.0
    %937 = vmatpush1.msra.mxu0 0.0
    %938 = vmatprep.subr.mxu0 0.0
    %939 = vmatpush1.msra.mxu0 0.0
    %940 = vmatprep.subr.mxu0 0.0
    %941 = vmatpush1.msra.mxu0 0.0
    %942 = vmatprep.mubr.f32.mxu0 0.0
    %943 = vmatmul.mubr.f32.gmra.mrb[0].mxu0 %v775
    %v944 = vpop.f32.mrb[0].mxu0
    %v945 = vadd.f32 0.0, %v944
    %v946 = vpop.f32.mrb[0].mxu0
    %947 = vdwg.mxu0
    %v948 = vsub.f32 %v875, %v945
    %v949 = vld [vmem:[#allocation17] sm:$0x1]
    %v951 = vlaneseq
    %v952 = vshrl.u32 %v951, 7
    %v953 = vsub.s32 0, %v952
    %v954 = vrot.slane %v949, %v953
    %v956 = vadd.f32 %v948, %v954
    %957 = vmatprep.subr.mxu0 0.0
    %958 = vmatpush1.msra.mxu0 %v792
    %959 = vmatprep.subr.mxu0 0.0
    %960 = vmatpush1.msra.mxu0 %v793
    %961 = vmatprep.subr.mxu0 0.0
    %962 = vmatpush1.msra.mxu0 %v794
    %963 = vmatprep.subr.mxu0 0.0
    %964 = vmatpush1.msra.mxu0 %v795
    %965 = vmatprep.subr.mxu0 0.0
    %966 = vmatpush1.msra.mxu0 %v796
    %967 = vmatprep.subr.mxu0 0.0
    %968 = vmatpush1.msra.mxu0 %v797
    %969 = vmatprep.subr.mxu0 0.0
    %970 = vmatpush1.msra.mxu0 %v798
    %971 = vmatprep.subr.mxu0 0.0
    %972 = vmatpush1.msra.mxu0 %v799
    %973 = vmatprep.subr.mxu0 0.0
    %974 = vmatpush1.msra.mxu0 %v800
    %975 = vmatprep.subr.mxu0 0.0
    %976 = vmatpush1.msra.mxu0 %v801
    %977 = vmatprep.subr.mxu0 0.0
    %978 = vmatpush1.msra.mxu0 %v802
    %979 = vmatprep.subr.mxu0 0.0
    %980 = vmatpush1.msra.mxu0 %v803
    %981 = vmatprep.subr.mxu0 0.0
    %982 = vmatpush1.msra.mxu0 %v804
    %983 = vmatprep.subr.mxu0 0.0
    %984 = vmatpush1.msra.mxu0 %v805
    %985 = vmatprep.subr.mxu0 0.0
    %986 = vmatpush1.msra.mxu0 %v806
    %987 = vmatprep.subr.mxu0 0.0
    %988 = vmatpush1.msra.mxu0 %v807
    %989 = vmatprep.subr.mxu0 0.0
    %990 = vmatpush1.msra.mxu0 0.0
    %991 = vmatprep.subr.mxu0 0.0
    %992 = vmatpush1.msra.mxu0 0.0
    %993 = vmatprep.subr.mxu0 0.0
    %994 = vmatpush1.msra.mxu0 0.0
    %995 = vmatprep.subr.mxu0 0.0
    %996 = vmatpush1.msra.mxu0 0.0
    %997 = vmatprep.subr.mxu0 0.0
    %998 = vmatpush1.msra.mxu0 0.0
    %999 = vmatprep.subr.mxu0 0.0
    %1000 = vmatpush1.msra.mxu0 0.0
    %1001 = vmatprep.subr.mxu0 0.0
    %1002 = vmatpush1.msra.mxu0 0.0
    %1003 = vmatprep.subr.mxu0 0.0
    %1004 = vmatpush1.msra.mxu0 0.0
    %1005 = vmatprep.subr.mxu0 0.0
    %1006 = vmatpush1.msra.mxu0 0.0
    %1007 = vmatprep.subr.mxu0 0.0
    %1008 = vmatpush1.msra.mxu0 0.0
    %1009 = vmatprep.subr.mxu0 0.0
    %1010 = vmatpush1.msra.mxu0 0.0
    %1011 = vmatprep.subr.mxu0 0.0
    %1012 = vmatpush1.msra.mxu0 0.0
    %1013 = vmatprep.subr.mxu0 0.0
    %1014 = vmatpush1.msra.mxu0 0.0
    %1015 = vmatprep.subr.mxu0 0.0
    %1016 = vmatpush1.msra.mxu0 0.0
    %1017 = vmatprep.subr.mxu0 0.0
    %1018 = vmatpush1.msra.mxu0 0.0
    %1019 = vmatprep.subr.mxu0 0.0
    %1020 = vmatpush1.msra.mxu0 0.0
    %1021 = vmatprep.mubr.f32.mxu0 0.0
    %1022 = vmatmul.mubr.f32.gmra.mrb[0].mxu0 %v771
    %v1023 = vpop.f32.mrb[0].mxu0
    %v1024 = vadd.f32 0.0, %v1023
    %v1025 = vpop.f32.mrb[0].mxu0
    %1026 = vdwg.mxu0
    %1027 = vmatprep.subr.mxu0 0.0
    %1028 = vmatpush1.msra.mxu0 %v776
    %1029 = vmatprep.subr.mxu0 0.0
    %1030 = vmatpush1.msra.mxu0 %v777
    %1031 = vmatprep.subr.mxu0 0.0
    %1032 = vmatpush1.msra.mxu0 %v778
    %1033 = vmatprep.subr.mxu0 0.0
    %1034 = vmatpush1.msra.mxu0 %v779
    %1035 = vmatprep.subr.mxu0 0.0
    %1036 = vmatpush1.msra.mxu0 %v780
    %1037 = vmatprep.subr.mxu0 0.0
    %1038 = vmatpush1.msra.mxu0 %v781
    %1039 = vmatprep.subr.mxu0 0.0
    %1040 = vmatpush1.msra.mxu0 %v782
    %1041 = vmatprep.subr.mxu0 0.0
    %1042 = vmatpush1.msra.mxu0 %v783
    %1043 = vmatprep.subr.mxu0 0.0
    %1044 = vmatpush1.msra.mxu0 %v784
    %1045 = vmatprep.subr.mxu0 0.0
    %1046 = vmatpush1.msra.mxu0 %v785
    %1047 = vmatprep.subr.mxu0 0.0
    %1048 = vmatpush1.msra.mxu0 %v786
    %1049 = vmatprep.subr.mxu0 0.0
    %1050 = vmatpush1.msra.mxu0 %v787
    %1051 = vmatprep.subr.mxu0 0.0
    %1052 = vmatpush1.msra.mxu0 %v788
    %1053 = vmatprep.subr.mxu0 0.0
    %1054 = vmatpush1.msra.mxu0 %v789
    %1055 = vmatprep.subr.mxu0 0.0
    %1056 = vmatpush1.msra.mxu0 %v790
    %1057 = vmatprep.subr.mxu0 0.0
    %1058 = vmatpush1.msra.mxu0 %v791
    %1059 = vmatprep.subr.mxu0 0.0
    %1060 = vmatpush1.msra.mxu0 0.0
    %1061 = vmatprep.subr.mxu0 0.0
    %1062 = vmatpush1.msra.mxu0 0.0
    %1063 = vmatprep.subr.mxu0 0.0
    %1064 = vmatpush1.msra.mxu0 0.0
    %1065 = vmatprep.subr.mxu0 0.0
    %1066 = vmatpush1.msra.mxu0 0.0
    %1067 = vmatprep.subr.mxu0 0.0
    %1068 = vmatpush1.msra.mxu0 0.0
    %1069 = vmatprep.subr.mxu0 0.0
    %1070 = vmatpush1.msra.mxu0 0.0
    %1071 = vmatprep.subr.mxu0 0.0
    %1072 = vmatpush1.msra.mxu0 0.0
    %1073 = vmatprep.subr.mxu0 0.0
    %1074 = vmatpush1.msra.mxu0 0.0
    %1075 = vmatprep.subr.mxu0 0.0
    %1076 = vmatpush1.msra.mxu0 0.0
    %1077 = vmatprep.subr.mxu0 0.0
    %1078 = vmatpush1.msra.mxu0 0.0
    %1079 = vmatprep.subr.mxu0 0.0
    %1080 = vmatpush1.msra.mxu0 0.0
    %1081 = vmatprep.subr.mxu0 0.0
    %1082 = vmatpush1.msra.mxu0 0.0
    %1083 = vmatprep.subr.mxu0 0.0
    %1084 = vmatpush1.msra.mxu0 0.0
    %1085 = vmatprep.subr.mxu0 0.0
    %1086 = vmatpush1.msra.mxu0 0.0
    %1087 = vmatprep.subr.mxu0 0.0
    %1088 = vmatpush1.msra.mxu0 0.0
    %1089 = vmatprep.subr.mxu0 0.0
    %1090 = vmatpush1.msra.mxu0 0.0
    %1091 = vmatprep.mubr.f32.mxu0 0.0
    %1092 = vmatmul.mubr.f32.gmra.mrb[0].mxu0 %v775
    %v1093 = vpop.f32.mrb[0].mxu0
    %v1094 = vadd.f32 %v1024, %v1093
    %v1095 = vpop.f32.mrb[0].mxu0
    %1096 = vdwg.mxu0
    %v1097 = vld [vmem:[#allocation19] sm:$0x1]
    %v1099 = vlaneseq
    %v1100 = vshrl.u32 %v1099, 7
    %v1101 = vsub.s32 0, %v1100
    %v1102 = vrot.slane %v1097, %v1101
    %v1104 = vadd.f32 %v1094, %v1102
    %v1105 = vld [vmem:[#allocation22] sm:$0x1]
    %v1107 = vlaneseq
    %v1108 = vshrl.u32 %v1107, 7
    %v1109 = vsub.s32 0, %v1108
    %v1110 = vrot.slane %v1105, %v1109
    %v1112 = vmul.f32 %v1110, %v956
    %v1113 = vld [vmem:[#allocation20] sm:$0x1]
    %v1115 = vlaneseq
    %v1116 = vshrl.u32 %v1115, 7
    %v1117 = vsub.s32 0, %v1116
    %v1118 = vrot.slane %v1113, %v1117
    %v1120 = vmul.f32 %v1118, %v1104
    %v1121 = vsub.f32 %v1112, %v1120
    %v1122 = vmul.f32 %v956, %v956
    %v1123 = vmul.f32 %v1104, %v1104
    %v1124 = vadd.f32 %v1122, %v1123
    %v1125 = vmax.f32 %v1124, 1e-30
    %v1126 = vmul.f32 %v1121, %v1121
    %v1127 = vrcp.pop %v1125
    %v1128 = vmul.f32 %v1126, %v1127
    %1129 = vst [vmem:[#allocation23] sm:$0xff] %v1128
    // Predicated region
    $region106: #{tpu_custom_call.1} parent=1 // pred_check
      _
    $region107: #{tpu_custom_call.1} parent=1 // pred_check_branch
      %1131 = sbr.rel (0) target = $region109
    $region108: #{tpu_custom_call.1} parent=1 // pred_region
      %s1133 = ssub.s32 128, 128
      %1134 = vsyncadd [#allocation4], %s1133
      %s1136 = sshll.u32 [#allocation23], 4
      %s1137 = int_to_ptr.vmem [resolvable:$true] %s1136
      %1139 = dma.vmem_to_hbm [thread:$0]  %s1137, 128, %s13, [#allocation4]
    $region109: #{tpu_custom_call.1} parent=1 // pred_fallthru
      _
    // Predicated region
    $region110: #{tpu_custom_call.1} parent=1 // pred_check
      _
    $region111: #{tpu_custom_call.1} parent=1 // pred_check_branch
      %1141 = sbr.rel (0) target = $region113
    $region112: #{tpu_custom_call.1} parent=1 // pred_region
      %1142 = dma.done [#allocation4], 128
    $region113: #{tpu_custom_call.1} parent=1 // pred_fallthru
      _
    %1143 = vsyncpa [#allocation3], 1
    %1144 = vsyncpa [#allocation6], 1
    %1145 = vsyncpa [#allocation9], 1
    %1146 = vsyncpa [#allocation12], 1
    %1147 = vsyncpa [#allocation15], 1
    %1148 = vsyncpa [#allocation18], 1
    %1149 = vsyncpa [#allocation21], 1
    %1150 = vsyncpa [#allocation4], 1

// kernel: tpu_custom_call.1
$region0: #{tpu_custom_call.1}
  #allocation0 [shape = 'u32[]', space=smem, size = 0x4, offset = 0x4, fixed_abs, tag = 'smem constant byte address 0x4 - core index']
  #allocation1 [shape = 'u32[144,128]{1,0:T(1,128)}', space=vmem, size = 0x12000, scoped, tag = 'internal scratch']
  %s0 = inlined_call_operand.hbm [shape: f32[8,128], index: 0, kind: input, shape index: {}]
  %s1 = inlined_call_operand.hbm [shape: f32[128,128], index: 1, kind: input, shape index: {}]
  %s2 = inlined_call_operand.hbm [shape: f32[128,128], index: 2, kind: input, shape index: {}]
  %s3 = inlined_call_operand.hbm [shape: f32[1,128], index: 3, kind: input, shape index: {}]
  %s4 = inlined_call_operand.hbm [shape: f32[1,128], index: 4, kind: input, shape index: {}]
  %s5 = inlined_call_operand.hbm [shape: f32[1,128], index: 5, kind: input, shape index: {}]
  %s6 = inlined_call_operand.hbm [shape: f32[1,128], index: 6, kind: input, shape index: {}]
  %s7 = inlined_call_operand.hbm [shape: f32[128,128], index: 7, kind: input, shape index: {}]
  %s8 = inlined_call_operand.hbm [shape: f32[128,128], index: 8, kind: input, shape index: {}]
  %s9 = inlined_call_operand.hbm [shape: f32[1,128], index: 9, kind: input, shape index: {}]
  %s10 = inlined_call_operand.hbm [shape: f32[1,128], index: 10, kind: input, shape index: {}]
  %s11 = inlined_call_operand.hbm [shape: f32[1,128], index: 11, kind: input, shape index: {}]
  %s12 = inlined_call_operand.hbm [shape: f32[1,128], index: 12, kind: input, shape index: {}]
  %s13 = inlined_call_operand.hbm [shape: f32[8,128], index: 13, kind: output, shape index: {}]
  %s14 = sld [smem:[#allocation0]]
  $region114: #{tpu_custom_call.1} parent=0
    _
  %s16 = ssub.s32 1, %s14
  %s17 = scalar_select 0, %s16, %s14
  $region1: #{tpu_custom_call.1} parent=0
    #allocation2 [shape = 'u8[4096]{0}', space=vmem, size = 0x1000, scoped, tag = 'input window, operand 0, single buffered']
    #allocation3 [shape = 's32[1]{0}', space=sflag, size = 0x4, scoped, tag = 'scoped memory for tpu_custom_call.1']
    #allocation4 [shape = 's32[1]{0}', space=sflag, size = 0x4, scoped, tag = 'scoped memory for tpu_custom_call.1']
    #allocation5 [shape = 'u8[65536]{0}', space=vmem, size = 0x10000, scoped, tag = 'input window, operand 1, single buffered']
    #allocation6 [shape = 's32[1]{0}', space=sflag, size = 0x4, scoped, tag = 'scoped memory for tpu_custom_call.1']
    #allocation7 [shape = 'u8[65536]{0}', space=vmem, size = 0x10000, scoped, tag = 'input window, operand 2, single buffered']
    #allocation8 [shape = 'u8[512]{0}', space=vmem, size = 0x400, scoped, tag = 'input window, operand 3, single buffered']
    #allocation9 [shape = 's32[1]{0}', space=sflag, size = 0x4, scoped, tag = 'scoped memory for tpu_custom_call.1']
    #allocation10 [shape = 'u8[512]{0}', space=vmem, size = 0x400, scoped, tag = 'input window, operand 4, single buffered']
    #allocation11 [shape = 'u8[512]{0}', space=vmem, size = 0x400, scoped, tag = 'input window, operand 5, single buffered']
    #allocation12 [shape = 's32[1]{0}', space=sflag, size = 0x4, scoped, tag = 'scoped memory for tpu_custom_call.1']
    #allocation13 [shape = 'u8[512]{0}', space=vmem, size = 0x400, scoped, tag = 'input window, operand 6, single buffered']
    #allocation14 [shape = 'u8[65536]{0}', space=vmem, size = 0x10000, scoped, tag = 'input window, operand 7, single buffered']
    #allocation15 [shape = 's32[1]{0}', space=sflag, size = 0x4, scoped, tag = 'scoped memory for tpu_custom_call.1']
    #allocation16 [shape = 'u8[65536]{0}', space=vmem, size = 0x10000, scoped, tag = 'input window, operand 8, single buffered']
    #allocation17 [shape = 'u8[512]{0}', space=vmem, size = 0x400, scoped, tag = 'input window, operand 9, single buffered']
    #allocation18 [shape = 's32[1]{0}', space=sflag, size = 0x4, scoped, tag = 'scoped memory for tpu_custom_call.1']
    #allocation19 [shape = 'u8[512]{0}', space=vmem, size = 0x400, scoped, tag = 'input window, operand 10, single buffered']
    #allocation20 [shape = 'u8[512]{0}', space=vmem, size = 0x400, scoped, tag = 'input window, operand 11, single buffered']
    #allocation21 [shape = 's32[1]{0}', space=sflag, size = 0x4, scoped, tag = 'scoped memory for tpu_custom_call.1']
    #allocation22 [shape = 'u8[512]{0}', space=vmem, size = 0x400, scoped, tag = 'input window, operand 12, single buffered']
    #allocation23 [shape = 'u8[4096]{0}', space=vmem, size = 0x1000, scoped, tag = 'output window, operand 0, single buffered']
    %18 = vsyncpa [#allocation3], 0
    %19 = vsyncpa [#allocation6], 0
    %20 = vsyncpa [#allocation9], 0
    %21 = vsyncpa [#allocation12], 0
    %22 = vsyncpa [#allocation15], 0
    %23 = vsyncpa [#allocation18], 0
    %24 = vsyncpa [#allocation21], 0
    %25 = vsyncpa [#allocation4], 0
    // Predicated region
    $region2: #{tpu_custom_call.1} parent=1 // pred_check
      _
    $region3: #{tpu_custom_call.1} parent=1 // pred_check_branch
      %27 = sbr.rel (0) target = $region5
    $region4: #{tpu_custom_call.1} parent=1 // pred_region
      %s29 = ssub.s32 128, 128
      %30 = vsyncadd [#allocation3], %s29
      %s32 = sshll.u32 [#allocation2], 4
      %s33 = int_to_ptr.vmem [resolvable:$true] %s32
      %35 = dma.hbm_to_vmem [thread:$0]  %s0, 128, %s33, [#allocation3]
    $region5: #{tpu_custom_call.1} parent=1 // pred_fallthru
      _
    // Predicated region
    $region6: #{tpu_custom_call.1} parent=1 // pred_check
      _
    $region7: #{tpu_custom_call.1} parent=1 // pred_check_branch
      %37 = sbr.rel (0) target = $region9
    $region8: #{tpu_custom_call.1} parent=1 // pred_region
      %s39 = ssub.s32 2048, 2048
      %40 = vsyncadd [#allocation6], %s39
      %s41 = sshll.u32 [#allocation5], 4
      %s42 = int_to_ptr.vmem [resolvable:$true] %s41
      %47 = dma.hbm_to_vmem [thread:$0]  %s1, 2048, %s42, [#allocation6], 128, 128, 8
    $region9: #{tpu_custom_call.1} parent=1 // pred_fallthru
      _
    // Predicated region
    $region10: #{tpu_custom_call.1} parent=1 // pred_check
      _
    $region11: #{tpu_custom_call.1} parent=1 // pred_check_branch
      %49 = sbr.rel (0) target = $region13
    $region12: #{tpu_custom_call.1} parent=1 // pred_region
      %s51 = ssub.s32 2048, 2048
      %52 = vsyncadd [#allocation6], %s51
      %s53 = sshll.u32 [#allocation7], 4
      %s54 = int_to_ptr.vmem [resolvable:$true] %s53
      %59 = dma.hbm_to_vmem [thread:$0]  %s2, 2048, %s54, [#allocation6], 128, 128, 8
    $region13: #{tpu_custom_call.1} parent=1 // pred_fallthru
      _
    // Predicated region
    $region14: #{tpu_custom_call.1} parent=1 // pred_check
      _
    $region15: #{tpu_custom_call.1} parent=1 // pred_check_branch
      %61 = sbr.rel (0) target = $region17
    $region16: #{tpu_custom_call.1} parent=1 // pred_region
      %s63 = ssub.s32 16, 16
      %64 = vsyncadd [#allocation9], %s63
      %s66 = sshll.u32 [#allocation8], 4
      %s67 = int_to_ptr.vmem [resolvable:$true] %s66
      %69 = dma.hbm_to_vmem [thread:$0]  %s3, 16, %s67, [#allocation9]
    $region17: #{tpu_custom_call.1} parent=1 // pred_fallthru
      _
    // Predicated region
    $region18: #{tpu_custom_call.1} parent=1 // pred_check
      _
    $region19: #{tpu_custom_call.1} parent=1 // pred_check_branch
      %71 = sbr.rel (0) target = $region21
    $region20: #{tpu_custom_call.1} parent=1 // pred_region
      %s73 = ssub.s32 16, 16
      %74 = vsyncadd [#allocation9], %s73
      %s76 = sshll.u32 [#allocation10], 4
      %s77 = int_to_ptr.vmem [resolvable:$true] %s76
      %79 = dma.hbm_to_vmem [thread:$0]  %s4, 16, %s77, [#allocation9]
    $region21: #{tpu_custom_call.1} parent=1 // pred_fallthru
      _
    // Predicated region
    $region22: #{tpu_custom_call.1} parent=1 // pred_check
      _
    $region23: #{tpu_custom_call.1} parent=1 // pred_check_branch
      %81 = sbr.rel (0) target = $region25
    $region24: #{tpu_custom_call.1} parent=1 // pred_region
      %s83 = ssub.s32 16, 16
      %84 = vsyncadd [#allocation12], %s83
      %s86 = sshll.u32 [#allocation11], 4
      %s87 = int_to_ptr.vmem [resolvable:$true] %s86
      %89 = dma.hbm_to_vmem [thread:$0]  %s5, 16, %s87, [#allocation12]
    $region25: #{tpu_custom_call.1} parent=1 // pred_fallthru
      _
    // Predicated region
    $region26: #{tpu_custom_call.1} parent=1 // pred_check
      _
    $region27: #{tpu_custom_call.1} parent=1 // pred_check_branch
      %91 = sbr.rel (0) target = $region29
    $region28: #{tpu_custom_call.1} parent=1 // pred_region
      %s93 = ssub.s32 16, 16
      %94 = vsyncadd [#allocation12], %s93
      %s96 = sshll.u32 [#allocation13], 4
      %s97 = int_to_ptr.vmem [resolvable:$true] %s96
      %99 = dma.hbm_to_vmem [thread:$0]  %s6, 16, %s97, [#allocation12]
    $region29: #{tpu_custom_call.1} parent=1 // pred_fallthru
      _
    // Predicated region
    $region30: #{tpu_custom_call.1} parent=1 // pred_check
      _
    $region31: #{tpu_custom_call.1} parent=1 // pred_check_branch
      %101 = sbr.rel (0) target = $region33
    $region32: #{tpu_custom_call.1} parent=1 // pred_region
      %s103 = ssub.s32 2048, 2048
      %104 = vsyncadd [#allocation15], %s103
      %s105 = sshll.u32 [#allocation14], 4
      %s106 = int_to_ptr.vmem [resolvable:$true] %s105
      %111 = dma.hbm_to_vmem [thread:$0]  %s7, 2048, %s106, [#allocation15], 128, 128, 8
    $region33: #{tpu_custom_call.1} parent=1 // pred_fallthru
      _
    // Predicated region
    $region34: #{tpu_custom_call.1} parent=1 // pred_check
      _
    $region35: #{tpu_custom_call.1} parent=1 // pred_check_branch
      %113 = sbr.rel (0) target = $region37
    $region36: #{tpu_custom_call.1} parent=1 // pred_region
      %s115 = ssub.s32 2048, 2048
      %116 = vsyncadd [#allocation15], %s115
      %s117 = sshll.u32 [#allocation16], 4
      %s118 = int_to_ptr.vmem [resolvable:$true] %s117
      %123 = dma.hbm_to_vmem [thread:$0]  %s8, 2048, %s118, [#allocation15], 128, 128, 8
    $region37: #{tpu_custom_call.1} parent=1 // pred_fallthru
      _
    // Predicated region
    $region38: #{tpu_custom_call.1} parent=1 // pred_check
      _
    $region39: #{tpu_custom_call.1} parent=1 // pred_check_branch
      %125 = sbr.rel (0) target = $region41
    $region40: #{tpu_custom_call.1} parent=1 // pred_region
      %s127 = ssub.s32 16, 16
      %128 = vsyncadd [#allocation18], %s127
      %s130 = sshll.u32 [#allocation17], 4
      %s131 = int_to_ptr.vmem [resolvable:$true] %s130
      %133 = dma.hbm_to_vmem [thread:$0]  %s9, 16, %s131, [#allocation18]
    $region41: #{tpu_custom_call.1} parent=1 // pred_fallthru
      _
    // Predicated region
    $region42: #{tpu_custom_call.1} parent=1 // pred_check
      _
    $region43: #{tpu_custom_call.1} parent=1 // pred_check_branch
      %135 = sbr.rel (0) target = $region45
    $region44: #{tpu_custom_call.1} parent=1 // pred_region
      %s137 = ssub.s32 16, 16
      %138 = vsyncadd [#allocation18], %s137
      %s140 = sshll.u32 [#allocation19], 4
      %s141 = int_to_ptr.vmem [resolvable:$true] %s140
      %143 = dma.hbm_to_vmem [thread:$0]  %s10, 16, %s141, [#allocation18]
    $region45: #{tpu_custom_call.1} parent=1 // pred_fallthru
      _
    // Predicated region
    $region46: #{tpu_custom_call.1} parent=1 // pred_check
      _
    $region47: #{tpu_custom_call.1} parent=1 // pred_check_branch
      %145 = sbr.rel (0) target = $region49
    $region48: #{tpu_custom_call.1} parent=1 // pred_region
      %s147 = ssub.s32 16, 16
      %148 = vsyncadd [#allocation21], %s147
      %s150 = sshll.u32 [#allocation20], 4
      %s151 = int_to_ptr.vmem [resolvable:$true] %s150
      %153 = dma.hbm_to_vmem [thread:$0]  %s11, 16, %s151, [#allocation21]
    $region49: #{tpu_custom_call.1} parent=1 // pred_fallthru
      _
    // Predicated region
    $region50: #{tpu_custom_call.1} parent=1 // pred_check
      _
    $region51: #{tpu_custom_call.1} parent=1 // pred_check_branch
      %155 = sbr.rel (0) target = $region53
    $region52: #{tpu_custom_call.1} parent=1 // pred_region
      %s157 = ssub.s32 16, 16
      %158 = vsyncadd [#allocation21], %s157
      %s160 = sshll.u32 [#allocation22], 4
      %s161 = int_to_ptr.vmem [resolvable:$true] %s160
      %163 = dma.hbm_to_vmem [thread:$0]  %s12, 16, %s161, [#allocation21]
    $region53: #{tpu_custom_call.1} parent=1 // pred_fallthru
      _
    // Predicated region
    $region54: #{tpu_custom_call.1} parent=1 // pred_check
      _
    $region55: #{tpu_custom_call.1} parent=1 // pred_check_branch
      %165 = sbr.rel (0) target = $region57
    $region56: #{tpu_custom_call.1} parent=1 // pred_region
      %166 = dma.done [#allocation3], 128
    $region57: #{tpu_custom_call.1} parent=1 // pred_fallthru
      _
    // Predicated region
    $region58: #{tpu_custom_call.1} parent=1 // pred_check
      _
    $region59: #{tpu_custom_call.1} parent=1 // pred_check_branch
      %168 = sbr.rel (0) target = $region61
    $region60: #{tpu_custom_call.1} parent=1 // pred_region
      %169 = dma.done [#allocation6], 2048
    $region61: #{tpu_custom_call.1} parent=1 // pred_fallthru
      _
    // Predicated region
    $region62: #{tpu_custom_call.1} parent=1 // pred_check
      _
    $region63: #{tpu_custom_call.1} parent=1 // pred_check_branch
      %171 = sbr.rel (0) target = $region65
    $region64: #{tpu_custom_call.1} parent=1 // pred_region
      %172 = dma.done [#allocation6], 2048
    $region65: #{tpu_custom_call.1} parent=1 // pred_fallthru
      _
    // Predicated region
    $region66: #{tpu_custom_call.1} parent=1 // pred_check
      _
    $region67: #{tpu_custom_call.1} parent=1 // pred_check_branch
      %174 = sbr.rel (0) target = $region69
    $region68: #{tpu_custom_call.1} parent=1 // pred_region
      %175 = dma.done [#allocation9], 16
    $region69: #{tpu_custom_call.1} parent=1 // pred_fallthru
      _
    // Predicated region
    $region70: #{tpu_custom_call.1} parent=1 // pred_check
      _
    $region71: #{tpu_custom_call.1} parent=1 // pred_check_branch
      %177 = sbr.rel (0) target = $region73
    $region72: #{tpu_custom_call.1} parent=1 // pred_region
      %178 = dma.done [#allocation9], 16
    $region73: #{tpu_custom_call.1} parent=1 // pred_fallthru
      _
    // Predicated region
    $region74: #{tpu_custom_call.1} parent=1 // pred_check
      _
    $region75: #{tpu_custom_call.1} parent=1 // pred_check_branch
      %180 = sbr.rel (0) target = $region77
    $region76: #{tpu_custom_call.1} parent=1 // pred_region
      %181 = dma.done [#allocation12], 16
    $region77: #{tpu_custom_call.1} parent=1 // pred_fallthru
      _
    // Predicated region
    $region78: #{tpu_custom_call.1} parent=1 // pred_check
      _
    $region79: #{tpu_custom_call.1} parent=1 // pred_check_branch
      %183 = sbr.rel (0) target = $region81
    $region80: #{tpu_custom_call.1} parent=1 // pred_region
      %184 = dma.done [#allocation12], 16
    $region81: #{tpu_custom_call.1} parent=1 // pred_fallthru
      _
    // Predicated region
    $region82: #{tpu_custom_call.1} parent=1 // pred_check
      _
    $region83: #{tpu_custom_call.1} parent=1 // pred_check_branch
      %186 = sbr.rel (0) target = $region85
    $region84: #{tpu_custom_call.1} parent=1 // pred_region
      %187 = dma.done [#allocation15], 2048
    $region85: #{tpu_custom_call.1} parent=1 // pred_fallthru
      _
    // Predicated region
    $region86: #{tpu_custom_call.1} parent=1 // pred_check
      _
    $region87: #{tpu_custom_call.1} parent=1 // pred_check_branch
      %189 = sbr.rel (0) target = $region89
    $region88: #{tpu_custom_call.1} parent=1 // pred_region
      %190 = dma.done [#allocation15], 2048
    $region89: #{tpu_custom_call.1} parent=1 // pred_fallthru
      _
    // Predicated region
    $region90: #{tpu_custom_call.1} parent=1 // pred_check
      _
    $region91: #{tpu_custom_call.1} parent=1 // pred_check_branch
      %192 = sbr.rel (0) target = $region93
    $region92: #{tpu_custom_call.1} parent=1 // pred_region
      %193 = dma.done [#allocation18], 16
    $region93: #{tpu_custom_call.1} parent=1 // pred_fallthru
      _
    // Predicated region
    $region94: #{tpu_custom_call.1} parent=1 // pred_check
      _
    $region95: #{tpu_custom_call.1} parent=1 // pred_check_branch
      %195 = sbr.rel (0) target = $region97
    $region96: #{tpu_custom_call.1} parent=1 // pred_region
      %196 = dma.done [#allocation18], 16
    $region97: #{tpu_custom_call.1} parent=1 // pred_fallthru
      _
    // Predicated region
    $region98: #{tpu_custom_call.1} parent=1 // pred_check
      _
    $region99: #{tpu_custom_call.1} parent=1 // pred_check_branch
      %198 = sbr.rel (0) target = $region101
    $region100: #{tpu_custom_call.1} parent=1 // pred_region
      %199 = dma.done [#allocation21], 16
    $region101: #{tpu_custom_call.1} parent=1 // pred_fallthru
      _
    // Predicated region
    $region102: #{tpu_custom_call.1} parent=1 // pred_check
      _
    $region103: #{tpu_custom_call.1} parent=1 // pred_check_branch
      %201 = sbr.rel (0) target = $region105
    $region104: #{tpu_custom_call.1} parent=1 // pred_region
      %202 = dma.done [#allocation21], 16
    $region105: #{tpu_custom_call.1} parent=1 // pred_fallthru
      _
    %v203 = vld [vmem:[#allocation2] sm:$0xff]
    %v204 = vmul.f32 %v203, 1.5707964
    %v205 = vand.u32 2147483647, %v204
    %vm206 = vcmp.le.f32.partialorder %v205, 0.7853982
    %vm207 = vcmp.lt.s32.totalorder %v204, 0
    %v208 = vand.u32 %v204, 2139095040
    %v209 = vshrl.u32 %v208, 23
    %v210 = vsub.s32 %v209, 127
    %v211 = vand.u32 2147483647, %v204
    %v212 = vand.u32 %v211, 8388607
    %v213 = vor.u32 %v212, 8388608
    %v214 = vsub.s32 0, %v213
    %v215 = vadd.s32 %v210, 1
    %vm216 = vcmp.gt.s32.totalorder %v215, 0
    %v217 = vsel %vm216, %v215, 0
    %v218 = vshrl.u32 %v217, 5
    %v219 = vand.u32 %v217, 31
    %v220 = vsub.s32 32, %v219
    %v221 = vshrl.u32 683565275, %v220
    %v222 = vshll.u32 683565275, %v219
    %v223 = vshrl.u32 2475754826, %v220
    %v224 = vor.u32 %v222, %v223
    %v225 = vshll.u32 2475754826, %v219
    %v226 = vshrl.u32 2131351028, %v220
    %v227 = vor.u32 %v225, %v226
    %v228 = vshll.u32 2131351028, %v219
    %v229 = vshrl.u32 2102212464, %v220
    %v230 = vor.u32 %v228, %v229
    %v231 = vshll.u32 2102212464, %v219
    %v232 = vshrl.u32 920167782, %v220
    %v233 = vor.u32 %v231, %v232
    %v234 = vshll.u32 920167782, %v219
    %v235 = vshrl.u32 1326507024, %v220
    %v236 = vor.u32 %v234, %v235
    %vm237 = vcmp.lt.s32.totalorder %v218, 1
    %vm238 = vcmp.lt.s32.totalorder %v218, 2
    %vm239 = vcmp.lt.s32.totalorder %v218, 3
    %vm240 = vcmp.lt.s32.totalorder %v218, 4
    %v241 = vsel %vm237, %v221, %v224
    %v242 = vsel %vm240, %v230, 2102212464
    %v243 = vsel %vm239, %v227, %v242
    %v244 = vsel %vm238, %v241, %v243
    %v245 = vsel %vm237, %v224, %v227
    %v246 = vsel %vm240, %v233, 920167782
    %v247 = vsel %vm239, %v230, %v246
    %v248 = vsel %vm238, %v245, %v247
    %v249 = vsel %vm237, %v227, %v230
    %v250 = vsel %vm240, %v236, 1326507024
    %v251 = vsel %vm239, %v233, %v250
    %v252 = vsel %vm238, %v249, %v251
    %v253 = vshll.u32 %v213, 8
    %v254 = vmul.u32.u64.compose %v253, %v252
    %v255 = vextract.low.u32 %v254
    %v256 = vextract.high.u32 %v254
    %v257 = vmul.u32.u64.compose %v253, %v248
    %v258 = vextract.low.u32 %v257
    %v259 = vextract.high.u32 %v257
    %v260 = vmul.u32 %v253, %v244
    %v261 = vadd.s32 %v256, %v258
    %vm262 = vc.u32 %v256, %v258
    %v263 = vadd.s32 %v259, 1
    %v264 = vsel %vm262, %v263, %v259
    %v265 = vadd.s32 %v260, %v264
    %v266 = vadd.s32 %v265, 536870912
    %v267 = vshrl.u32 %v266, 30
    %v268 = vshll.u32 %v267, 30
    %v269 = vsub.s32 %v265, %v268
    %vm270 = vcmp.lt.s32.totalorder %v269, 0
    %v271 = vsub.s32 0, %v269
    %v272 = vsel %vm270, %v271, %v269
    %v273 = vclz %v272
    %v274 = vsub.s32 %v273, 2
    %vm275 = vcmp.gt.s32.totalorder 0, %v274
    %v276 = vsel %vm275, 0, %v274
    %v277 = vsub.s32 32, %v276
    %v278 = vshll.u32 %v269, %v276
    %v279 = vshrl.u32 %v261, %v277
    %v280 = vor.u32 %v278, %v279
    %v281 = vsub.s32 4294967266, %v276
    %v282 = vadd.s32 %v281, 127
    %v283 = vshll.u32 %v282, 23
    %v284 = vor.u32 4788187, %v283
    %v285 = vand.u32 2147483647, %v284
    %v287 = vcvt.s32.f32 %v280
    %v288 = vmul.f32 %v287, %v285
    %v289 = vxor.u32 %v288, 2147483648
    %v290 = vsel %vm207, %v289, %v288
    %v291 = vsub.s32 4, %v267
    %v292 = vsel %vm207, %v291, %v267
    %v293 = vsel %vm206, %v204, %v290
    %v294 = vsel %vm206, 0, %v292
    %v295 = vcosq.f32.pop %v293
    %v296 = vsinq.f32.pop %v293
    %vm297 = vweird.f32 %v204
    %v298 = vand.u32 %v294, 3
    %vm299 = vcmp.lt.s32.totalorder %v298, 2
    %vm300 = vcmp.eq.s32.totalorder %v298, 0
    %v301 = vxor.u32 %v296, 2147483648
    %v302 = vsel %vm300, %v295, %v301
    %vm303 = vcmp.eq.s32.totalorder %v298, 2
    %v304 = vxor.u32 %v295, 2147483648
    %v305 = vsel %vm303, %v304, %v296
    %v306 = vsel %vm299, %v302, %v305
    %v307 = vsel %vm297, nan, %v306
    %v308 = vand.u32 2147483647, %v204
    %vm309 = vcmp.le.f32.partialorder %v308, 0.7853982
    %vm310 = vcmp.lt.s32.totalorder %v204, 0
    %v311 = vand.u32 %v204, 2139095040
    %v312 = vshrl.u32 %v311, 23
    %v313 = vsub.s32 %v312, 127
    %v314 = vand.u32 2147483647, %v204
    %v315 = vand.u32 %v314, 8388607
    %v316 = vor.u32 %v315, 8388608
    %v317 = vsub.s32 0, %v316
    %v318 = vadd.s32 %v313, 1
    %vm319 = vcmp.gt.s32.totalorder %v318, 0
    %v320 = vsel %vm319, %v318, 0
    %v321 = vshrl.u32 %v320, 5
    %v322 = vand.u32 %v320, 31
    %v323 = vsub.s32 32, %v322
    %v324 = vshrl.u32 683565275, %v323
    %v325 = vshll.u32 683565275, %v322
    %v326 = vshrl.u32 2475754826, %v323
    %v327 = vor.u32 %v325, %v326
    %v328 = vshll.u32 2475754826, %v322
    %v329 = vshrl.u32 2131351028, %v323
    %v330 = vor.u32 %v328, %v329
    %v331 = vshll.u32 2131351028, %v322
    %v332 = vshrl.u32 2102212464, %v323
    %v333 = vor.u32 %v331, %v332
    %v334 = vshll.u32 2102212464, %v322
    %v335 = vshrl.u32 920167782, %v323
    %v336 = vor.u32 %v334, %v335
    %v337 = vshll.u32 920167782, %v322
    %v338 = vshrl.u32 1326507024, %v323
    %v339 = vor.u32 %v337, %v338
    %vm340 = vcmp.lt.s32.totalorder %v321, 1
    %vm341 = vcmp.lt.s32.totalorder %v321, 2
    %vm342 = vcmp.lt.s32.totalorder %v321, 3
    %vm343 = vcmp.lt.s32.totalorder %v321, 4
    %v344 = vsel %vm340, %v324, %v327
    %v345 = vsel %vm343, %v333, 2102212464
    %v346 = vsel %vm342, %v330, %v345
    %v347 = vsel %vm341, %v344, %v346
    %v348 = vsel %vm340, %v327, %v330
    %v349 = vsel %vm343, %v336, 920167782
    %v350 = vsel %vm342, %v333, %v349
    %v351 = vsel %vm341, %v348, %v350
    %v352 = vsel %vm340, %v330, %v333
    %v353 = vsel %vm343, %v339, 1326507024
    %v354 = vsel %vm342, %v336, %v353
    %v355 = vsel %vm341, %v352, %v354
    %v356 = vshll.u32 %v316, 8
    %v357 = vmul.u32.u64.compose %v356, %v355
    %v358 = vextract.low.u32 %v357
    %v359 = vextract.high.u32 %v357
    %v360 = vmul.u32.u64.compose %v356, %v351
    %v361 = vextract.low.u32 %v360
    %v362 = vextract.high.u32 %v360
    %v363 = vmul.u32 %v356, %v347
    %v364 = vadd.s32 %v359, %v361
    %vm365 = vc.u32 %v359, %v361
    %v366 = vadd.s32 %v362, 1
    %v367 = vsel %vm365, %v366, %v362
    %v368 = vadd.s32 %v363, %v367
    %v369 = vadd.s32 %v368, 536870912
    %v370 = vshrl.u32 %v369, 30
    %v371 = vshll.u32 %v370, 30
    %v372 = vsub.s32 %v368, %v371
    %vm373 = vcmp.lt.s32.totalorder %v372, 0
    %v374 = vsub.s32 0, %v372
    %v375 = vsel %vm373, %v374, %v372
    %v376 = vclz %v375
    %v377 = vsub.s32 %v376, 2
    %vm378 = vcmp.gt.s32.totalorder 0, %v377
    %v379 = vsel %vm378, 0, %v377
    %v380 = vsub.s32 32, %v379
    %v381 = vshll.u32 %v372, %v379
    %v382 = vshrl.u32 %v364, %v380
    %v383 = vor.u32 %v381, %v382
    %v384 = vsub.s32 4294967266, %v379
    %v385 = vadd.s32 %v384, 127
    %v386 = vshll.u32 %v385, 23
    %v387 = vor.u32 4788187, %v386
    %v388 = vand.u32 2147483647, %v387
    %v390 = vcvt.s32.f32 %v383
    %v391 = vmul.f32 %v390, %v388
    %v392 = vxor.u32 %v391, 2147483648
    %v393 = vsel %vm310, %v392, %v391
    %v394 = vsub.s32 4, %v370
    %v395 = vsel %vm310, %v394, %v370
    %v396 = vsel %vm309, %v204, %v393
    %v397 = vsel %vm309, 0, %v395
    %v398 = vcosq.f32.pop %v396
    %v399 = vsinq.f32.pop %v396
    %vm400 = vweird.f32 %v204
    %v401 = vadd.s32 %v397, 3
    %v402 = vand.u32 %v401, 3
    %vm403 = vcmp.lt.s32.totalorder %v402, 2
    %vm404 = vcmp.eq.s32.totalorder %v402, 0
    %v405 = vxor.u32 %v399, 2147483648
    %v406 = vsel %vm404, %v398, %v405
    %vm407 = vcmp.eq.s32.totalorder %v402, 2
    %v408 = vxor.u32 %v398, 2147483648
    %v409 = vsel %vm407, %v408, %v399
    %v410 = vsel %vm403, %v406, %v409
    %v411 = vsel %vm400, nan, %v410
    %v412 = vld [vmem:[#allocation5] sm:$0xff]
    %v413 = vld [vmem:[#allocation5 + $0x8] sm:$0xff]
    %v414 = vld [vmem:[#allocation5 + $0x10] sm:$0xff]
    %v415 = vld [vmem:[#allocation5 + $0x18] sm:$0xff]
    %v416 = vld [vmem:[#allocation5 + $0x20] sm:$0xff]
    %v417 = vld [vmem:[#allocation5 + $0x28] sm:$0xff]
    %v418 = vld [vmem:[#allocation5 + $0x30] sm:$0xff]
    %v419 = vld [vmem:[#allocation5 + $0x38] sm:$0xff]
    %v420 = vld [vmem:[#allocation5 + $0x40] sm:$0xff]
    %v421 = vld [vmem:[#allocation5 + $0x48] sm:$0xff]
    %v422 = vld [vmem:[#allocation5 + $0x50] sm:$0xff]
    %v423 = vld [vmem:[#allocation5 + $0x58] sm:$0xff]
    %v424 = vld [vmem:[#allocation5 + $0x60] sm:$0xff]
    %v425 = vld [vmem:[#allocation5 + $0x68] sm:$0xff]
    %v426 = vld [vmem:[#allocation5 + $0x70] sm:$0xff]
    %v427 = vld [vmem:[#allocation5 + $0x78] sm:$0xff]
    %v428 = vld [vmem:[#allocation7] sm:$0xff]
    %v429 = vld [vmem:[#allocation7 + $0x8] sm:$0xff]
    %v430 = vld [vmem:[#allocation7 + $0x10] sm:$0xff]
    %v431 = vld [vmem:[#allocation7 + $0x18] sm:$0xff]
    %v432 = vld [vmem:[#allocation7 + $0x20] sm:$0xff]
    %v433 = vld [vmem:[#allocation7 + $0x28] sm:$0xff]
    %v434 = vld [vmem:[#allocation7 + $0x30] sm:$0xff]
    %v435 = vld [vmem:[#allocation7 + $0x38] sm:$0xff]
    %v436 = vld [vmem:[#allocation7 + $0x40] sm:$0xff]
    %v437 = vld [vmem:[#allocation7 + $0x48] sm:$0xff]
    %v438 = vld [vmem:[#allocation7 + $0x50] sm:$0xff]
    %v439 = vld [vmem:[#allocation7 + $0x58] sm:$0xff]
    %v440 = vld [vmem:[#allocation7 + $0x60] sm:$0xff]
    %v441 = vld [vmem:[#allocation7 + $0x68] sm:$0xff]
    %v442 = vld [vmem:[#allocation7 + $0x70] sm:$0xff]
    %v443 = vld [vmem:[#allocation7 + $0x78] sm:$0xff]
    %444 = vmatprep.subr.mxu0 0.0
    %445 = vmatpush1.msra.mxu0 %v412
    %446 = vmatprep.subr.mxu0 0.0
    %447 = vmatpush1.msra.mxu0 %v413
    %448 = vmatprep.subr.mxu0 0.0
    %449 = vmatpush1.msra.mxu0 %v414
    %450 = vmatprep.subr.mxu0 0.0
    %451 = vmatpush1.msra.mxu0 %v415
    %452 = vmatprep.subr.mxu0 0.0
    %453 = vmatpush1.msra.mxu0 %v416
    %454 = vmatprep.subr.mxu0 0.0
    %455 = vmatpush1.msra.mxu0 %v417
    %456 = vmatprep.subr.mxu0 0.0
    %457 = vmatpush1.msra.mxu0 %v418
    %458 = vmatprep.subr.mxu0 0.0
    %459 = vmatpush1.msra.mxu0 %v419
    %460 = vmatprep.subr.mxu0 0.0
    %461 = vmatpush1.msra.mxu0 %v420
    %462 = vmatprep.subr.mxu0 0.0
    %463 = vmatpush1.msra.mxu0 %v421
    %464 = vmatprep.subr.mxu0 0.0
    %465 = vmatpush1.msra.mxu0 %v422
    %466 = vmatprep.subr.mxu0 0.0
    %467 = vmatpush1.msra.mxu0 %v423
    %468 = vmatprep.subr.mxu0 0.0
    %469 = vmatpush1.msra.mxu0 %v424
    %470 = vmatprep.subr.mxu0 0.0
    %471 = vmatpush1.msra.mxu0 %v425
    %472 = vmatprep.subr.mxu0 0.0
    %473 = vmatpush1.msra.mxu0 %v426
    %474 = vmatprep.subr.mxu0 0.0
    %475 = vmatpush1.msra.mxu0 %v427
    %476 = vmatprep.subr.mxu0 0.0
    %477 = vmatpush1.msra.mxu0 0.0
    %478 = vmatprep.subr.mxu0 0.0
    %479 = vmatpush1.msra.mxu0 0.0
    %480 = vmatprep.subr.mxu0 0.0
    %481 = vmatpush1.msra.mxu0 0.0
    %482 = vmatprep.subr.mxu0 0.0
    %483 = vmatpush1.msra.mxu0 0.0
    %484 = vmatprep.subr.mxu0 0.0
    %485 = vmatpush1.msra.mxu0 0.0
    %486 = vmatprep.subr.mxu0 0.0
    %487 = vmatpush1.msra.mxu0 0.0
    %488 = vmatprep.subr.mxu0 0.0
    %489 = vmatpush1.msra.mxu0 0.0
    %490 = vmatprep.subr.mxu0 0.0
    %491 = vmatpush1.msra.mxu0 0.0
    %492 = vmatprep.subr.mxu0 0.0
    %493 = vmatpush1.msra.mxu0 0.0
    %494 = vmatprep.subr.mxu0 0.0
    %495 = vmatpush1.msra.mxu0 0.0
    %496 = vmatprep.subr.mxu0 0.0
    %497 = vmatpush1.msra.mxu0 0.0
    %498 = vmatprep.subr.mxu0 0.0
    %499 = vmatpush1.msra.mxu0 0.0
    %500 = vmatprep.subr.mxu0 0.0
    %501 = vmatpush1.msra.mxu0 0.0
    %502 = vmatprep.subr.mxu0 0.0
    %503 = vmatpush1.msra.mxu0 0.0
    %504 = vmatprep.subr.mxu0 0.0
    %505 = vmatpush1.msra.mxu0 0.0
    %506 = vmatprep.subr.mxu0 0.0
    %507 = vmatpush1.msra.mxu0 0.0
    %508 = vmatprep.mubr.f32.mxu0 0.0
    %509 = vmatmul.mubr.f32.gmra.mrb[0].mxu0 %v307
    %v510 = vpop.f32.mrb[0].mxu0
    %v511 = vadd.f32 0.0, %v510
    %v512 = vpop.f32.mrb[0].mxu0
    %513 = vdwg.mxu0
    %514 = vmatprep.subr.mxu0 0.0
    %515 = vmatpush1.msra.mxu0 %v428
    %516 = vmatprep.subr.mxu0 0.0
    %517 = vmatpush1.msra.mxu0 %v429
    %518 = vmatprep.subr.mxu0 0.0
    %519 = vmatpush1.msra.mxu0 %v430
    %520 = vmatprep.subr.mxu0 0.0
    %521 = vmatpush1.msra.mxu0 %v431
    %522 = vmatprep.subr.mxu0 0.0
    %523 = vmatpush1.msra.mxu0 %v432
    %524 = vmatprep.subr.mxu0 0.0
    %525 = vmatpush1.msra.mxu0 %v433
    %526 = vmatprep.subr.mxu0 0.0
    %527 = vmatpush1.msra.mxu0 %v434
    %528 = vmatprep.subr.mxu0 0.0
    %529 = vmatpush1.msra.mxu0 %v435
    %530 = vmatprep.subr.mxu0 0.0
    %531 = vmatpush1.msra.mxu0 %v436
    %532 = vmatprep.subr.mxu0 0.0
    %533 = vmatpush1.msra.mxu0 %v437
    %534 = vmatprep.subr.mxu0 0.0
    %535 = vmatpush1.msra.mxu0 %v438
    %536 = vmatprep.subr.mxu0 0.0
    %537 = vmatpush1.msra.mxu0 %v439
    %538 = vmatprep.subr.mxu0 0.0
    %539 = vmatpush1.msra.mxu0 %v440
    %540 = vmatprep.subr.mxu0 0.0
    %541 = vmatpush1.msra.mxu0 %v441
    %542 = vmatprep.subr.mxu0 0.0
    %543 = vmatpush1.msra.mxu0 %v442
    %544 = vmatprep.subr.mxu0 0.0
    %545 = vmatpush1.msra.mxu0 %v443
    %546 = vmatprep.subr.mxu0 0.0
    %547 = vmatpush1.msra.mxu0 0.0
    %548 = vmatprep.subr.mxu0 0.0
    %549 = vmatpush1.msra.mxu0 0.0
    %550 = vmatprep.subr.mxu0 0.0
    %551 = vmatpush1.msra.mxu0 0.0
    %552 = vmatprep.subr.mxu0 0.0
    %553 = vmatpush1.msra.mxu0 0.0
    %554 = vmatprep.subr.mxu0 0.0
    %555 = vmatpush1.msra.mxu0 0.0
    %556 = vmatprep.subr.mxu0 0.0
    %557 = vmatpush1.msra.mxu0 0.0
    %558 = vmatprep.subr.mxu0 0.0
    %559 = vmatpush1.msra.mxu0 0.0
    %560 = vmatprep.subr.mxu0 0.0
    %561 = vmatpush1.msra.mxu0 0.0
    %562 = vmatprep.subr.mxu0 0.0
    %563 = vmatpush1.msra.mxu0 0.0
    %564 = vmatprep.subr.mxu0 0.0
    %565 = vmatpush1.msra.mxu0 0.0
    %566 = vmatprep.subr.mxu0 0.0
    %567 = vmatpush1.msra.mxu0 0.0
    %568 = vmatprep.subr.mxu0 0.0
    %569 = vmatpush1.msra.mxu0 0.0
    %570 = vmatprep.subr.mxu0 0.0
    %571 = vmatpush1.msra.mxu0 0.0
    %572 = vmatprep.subr.mxu0 0.0
    %573 = vmatpush1.msra.mxu0 0.0
    %574 = vmatprep.subr.mxu0 0.0
    %575 = vmatpush1.msra.mxu0 0.0
    %576 = vmatprep.subr.mxu0 0.0
    %577 = vmatpush1.msra.mxu0 0.0
    %578 = vmatprep.mubr.f32.mxu0 0.0
    %579 = vmatmul.mubr.f32.gmra.mrb[0].mxu0 %v411
    %v580 = vpop.f32.mrb[0].mxu0
    %v581 = vadd.f32 0.0, %v580
    %v582 = vpop.f32.mrb[0].mxu0
    %583 = vdwg.mxu0
    %v584 = vsub.f32 %v511, %v581
    %v585 = vld [vmem:[#allocation8] sm:$0x1]
    %v587 = vlaneseq
    %v588 = vshrl.u32 %v587, 7
    %v589 = vsub.s32 0, %v588
    %v590 = vrot.slane %v585, %v589
    %v592 = vadd.f32 %v584, %v590
    %593 = vmatprep.subr.mxu0 0.0
    %594 = vmatpush1.msra.mxu0 %v428
    %595 = vmatprep.subr.mxu0 0.0
    %596 = vmatpush1.msra.mxu0 %v429
    %597 = vmatprep.subr.mxu0 0.0
    %598 = vmatpush1.msra.mxu0 %v430
    %599 = vmatprep.subr.mxu0 0.0
    %600 = vmatpush1.msra.mxu0 %v431
    %601 = vmatprep.subr.mxu0 0.0
    %602 = vmatpush1.msra.mxu0 %v432
    %603 = vmatprep.subr.mxu0 0.0
    %604 = vmatpush1.msra.mxu0 %v433
    %605 = vmatprep.subr.mxu0 0.0
    %606 = vmatpush1.msra.mxu0 %v434
    %607 = vmatprep.subr.mxu0 0.0
    %608 = vmatpush1.msra.mxu0 %v435
    %609 = vmatprep.subr.mxu0 0.0
    %610 = vmatpush1.msra.mxu0 %v436
    %611 = vmatprep.subr.mxu0 0.0
    %612 = vmatpush1.msra.mxu0 %v437
    %613 = vmatprep.subr.mxu0 0.0
    %614 = vmatpush1.msra.mxu0 %v438
    %615 = vmatprep.subr.mxu0 0.0
    %616 = vmatpush1.msra.mxu0 %v439
    %617 = vmatprep.subr.mxu0 0.0
    %618 = vmatpush1.msra.mxu0 %v440
    %619 = vmatprep.subr.mxu0 0.0
    %620 = vmatpush1.msra.mxu0 %v441
    %621 = vmatprep.subr.mxu0 0.0
    %622 = vmatpush1.msra.mxu0 %v442
    %623 = vmatprep.subr.mxu0 0.0
    %624 = vmatpush1.msra.mxu0 %v443
    %625 = vmatprep.subr.mxu0 0.0
    %626 = vmatpush1.msra.mxu0 0.0
    %627 = vmatprep.subr.mxu0 0.0
    %628 = vmatpush1.msra.mxu0 0.0
    %629 = vmatprep.subr.mxu0 0.0
    %630 = vmatpush1.msra.mxu0 0.0
    %631 = vmatprep.subr.mxu0 0.0
    %632 = vmatpush1.msra.mxu0 0.0
    %633 = vmatprep.subr.mxu0 0.0
    %634 = vmatpush1.msra.mxu0 0.0
    %635 = vmatprep.subr.mxu0 0.0
    %636 = vmatpush1.msra.mxu0 0.0
    %637 = vmatprep.subr.mxu0 0.0
    %638 = vmatpush1.msra.mxu0 0.0
    %639 = vmatprep.subr.mxu0 0.0
    %640 = vmatpush1.msra.mxu0 0.0
    %641 = vmatprep.subr.mxu0 0.0
    %642 = vmatpush1.msra.mxu0 0.0
    %643 = vmatprep.subr.mxu0 0.0
    %644 = vmatpush1.msra.mxu0 0.0
    %645 = vmatprep.subr.mxu0 0.0
    %646 = vmatpush1.msra.mxu0 0.0
    %647 = vmatprep.subr.mxu0 0.0
    %648 = vmatpush1.msra.mxu0 0.0
    %649 = vmatprep.subr.mxu0 0.0
    %650 = vmatpush1.msra.mxu0 0.0
    %651 = vmatprep.subr.mxu0 0.0
    %652 = vmatpush1.msra.mxu0 0.0
    %653 = vmatprep.subr.mxu0 0.0
    %654 = vmatpush1.msra.mxu0 0.0
    %655 = vmatprep.subr.mxu0 0.0
    %656 = vmatpush1.msra.mxu0 0.0
    %657 = vmatprep.mubr.f32.mxu0 0.0
    %658 = vmatmul.mubr.f32.gmra.mrb[0].mxu0 %v307
    %v659 = vpop.f32.mrb[0].mxu0
    %v660 = vadd.f32 0.0, %v659
    %v661 = vpop.f32.mrb[0].mxu0
    %662 = vdwg.mxu0
    %663 = vmatprep.subr.mxu0 0.0
    %664 = vmatpush1.msra.mxu0 %v412
    %665 = vmatprep.subr.mxu0 0.0
    %666 = vmatpush1.msra.mxu0 %v413
    %667 = vmatprep.subr.mxu0 0.0
    %668 = vmatpush1.msra.mxu0 %v414
    %669 = vmatprep.subr.mxu0 0.0
    %670 = vmatpush1.msra.mxu0 %v415
    %671 = vmatprep.subr.mxu0 0.0
    %672 = vmatpush1.msra.mxu0 %v416
    %673 = vmatprep.subr.mxu0 0.0
    %674 = vmatpush1.msra.mxu0 %v417
    %675 = vmatprep.subr.mxu0 0.0
    %676 = vmatpush1.msra.mxu0 %v418
    %677 = vmatprep.subr.mxu0 0.0
    %678 = vmatpush1.msra.mxu0 %v419
    %679 = vmatprep.subr.mxu0 0.0
    %680 = vmatpush1.msra.mxu0 %v420
    %681 = vmatprep.subr.mxu0 0.0
    %682 = vmatpush1.msra.mxu0 %v421
    %683 = vmatprep.subr.mxu0 0.0
    %684 = vmatpush1.msra.mxu0 %v422
    %685 = vmatprep.subr.mxu0 0.0
    %686 = vmatpush1.msra.mxu0 %v423
    %687 = vmatprep.subr.mxu0 0.0
    %688 = vmatpush1.msra.mxu0 %v424
    %689 = vmatprep.subr.mxu0 0.0
    %690 = vmatpush1.msra.mxu0 %v425
    %691 = vmatprep.subr.mxu0 0.0
    %692 = vmatpush1.msra.mxu0 %v426
    %693 = vmatprep.subr.mxu0 0.0
    %694 = vmatpush1.msra.mxu0 %v427
    %695 = vmatprep.subr.mxu0 0.0
    %696 = vmatpush1.msra.mxu0 0.0
    %697 = vmatprep.subr.mxu0 0.0
    %698 = vmatpush1.msra.mxu0 0.0
    %699 = vmatprep.subr.mxu0 0.0
    %700 = vmatpush1.msra.mxu0 0.0
    %701 = vmatprep.subr.mxu0 0.0
    %702 = vmatpush1.msra.mxu0 0.0
    %703 = vmatprep.subr.mxu0 0.0
    %704 = vmatpush1.msra.mxu0 0.0
    %705 = vmatprep.subr.mxu0 0.0
    %706 = vmatpush1.msra.mxu0 0.0
    %707 = vmatprep.subr.mxu0 0.0
    %708 = vmatpush1.msra.mxu0 0.0
    %709 = vmatprep.subr.mxu0 0.0
    %710 = vmatpush1.msra.mxu0 0.0
    %711 = vmatprep.subr.mxu0 0.0
    %712 = vmatpush1.msra.mxu0 0.0
    %713 = vmatprep.subr.mxu0 0.0
    %714 = vmatpush1.msra.mxu0 0.0
    %715 = vmatprep.subr.mxu0 0.0
    %716 = vmatpush1.msra.mxu0 0.0
    %717 = vmatprep.subr.mxu0 0.0
    %718 = vmatpush1.msra.mxu0 0.0
    %719 = vmatprep.subr.mxu0 0.0
    %720 = vmatpush1.msra.mxu0 0.0
    %721 = vmatprep.subr.mxu0 0.0
    %722 = vmatpush1.msra.mxu0 0.0
    %723 = vmatprep.subr.mxu0 0.0
    %724 = vmatpush1.msra.mxu0 0.0
    %725 = vmatprep.subr.mxu0 0.0
    %726 = vmatpush1.msra.mxu0 0.0
    %727 = vmatprep.mubr.f32.mxu0 0.0
    %728 = vmatmul.mubr.f32.gmra.mrb[0].mxu0 %v411
    %v729 = vpop.f32.mrb[0].mxu0
    %v730 = vadd.f32 %v660, %v729
    %v731 = vpop.f32.mrb[0].mxu0
    %732 = vdwg.mxu0
    %v733 = vld [vmem:[#allocation10] sm:$0x1]
    %v735 = vlaneseq
    %v736 = vshrl.u32 %v735, 7
    %v737 = vsub.s32 0, %v736
    %v738 = vrot.slane %v733, %v737
    %v740 = vadd.f32 %v730, %v738
    %v741 = vmul.f32 %v592, %v592
    %v742 = vmul.f32 %v740, %v740
    %v743 = vadd.f32 %v741, %v742
    %v744 = vmax.f32 %v743, 1e-30
    %v745 = vrsqrt.pop %v744
    %v746 = vmul.f32 %v744, %v745
    %vm747 = vcmp.eq.f32.partialorder %v744, inf
    %v748 = vsel %vm747, %v744, %v746
    %vm749 = vcmp.eq.f32.partialorder %v744, 0.0
    %v750 = vand.u32 %v744, 2147483648
    %v751 = vsel %vm749, %v750, %v748
    %v752 = vrcp.pop %v751
    %v753 = vmul.f32 1.0, %v752
    %v754 = vld [vmem:[#allocation11] sm:$0x1]
    %v755 = vld [vmem:[#allocation13] sm:$0x1]
    %v757 = vlaneseq
    %v758 = vshrl.u32 %v757, 7
    %v759 = vsub.s32 0, %v758
    %v760 = vrot.slane %v754, %v759
    %v762 = vmul.f32 %v760, %v592
    %v764 = vlaneseq
    %v765 = vshrl.u32 %v764, 7
    %v766 = vsub.s32 0, %v765
    %v767 = vrot.slane %v755, %v766
    %v769 = vmul.f32 %v767, %v740
    %v770 = vadd.f32 %v762, %v769
    %v771 = vmul.f32 %v770, %v753
    %v772 = vmul.f32 %v767, %v592
    %v773 = vmul.f32 %v760, %v740
    %v774 = vsub.f32 %v772, %v773
    %v775 = vmul.f32 %v774, %v753
    %v776 = vld [vmem:[#allocation14] sm:$0xff]
    %v777 = vld [vmem:[#allocation14 + $0x8] sm:$0xff]
    %v778 = vld [vmem:[#allocation14 + $0x10] sm:$0xff]
    %v779 = vld [vmem:[#allocation14 + $0x18] sm:$0xff]
    %v780 = vld [vmem:[#allocation14 + $0x20] sm:$0xff]
    %v781 = vld [vmem:[#allocation14 + $0x28] sm:$0xff]
    %v782 = vld [vmem:[#allocation14 + $0x30] sm:$0xff]
    %v783 = vld [vmem:[#allocation14 + $0x38] sm:$0xff]
    %v784 = vld [vmem:[#allocation14 + $0x40] sm:$0xff]
    %v785 = vld [vmem:[#allocation14 + $0x48] sm:$0xff]
    %v786 = vld [vmem:[#allocation14 + $0x50] sm:$0xff]
    %v787 = vld [vmem:[#allocation14 + $0x58] sm:$0xff]
    %v788 = vld [vmem:[#allocation14 + $0x60] sm:$0xff]
    %v789 = vld [vmem:[#allocation14 + $0x68] sm:$0xff]
    %v790 = vld [vmem:[#allocation14 + $0x70] sm:$0xff]
    %v791 = vld [vmem:[#allocation14 + $0x78] sm:$0xff]
    %v792 = vld [vmem:[#allocation16] sm:$0xff]
    %v793 = vld [vmem:[#allocation16 + $0x8] sm:$0xff]
    %v794 = vld [vmem:[#allocation16 + $0x10] sm:$0xff]
    %v795 = vld [vmem:[#allocation16 + $0x18] sm:$0xff]
    %v796 = vld [vmem:[#allocation16 + $0x20] sm:$0xff]
    %v797 = vld [vmem:[#allocation16 + $0x28] sm:$0xff]
    %v798 = vld [vmem:[#allocation16 + $0x30] sm:$0xff]
    %v799 = vld [vmem:[#allocation16 + $0x38] sm:$0xff]
    %v800 = vld [vmem:[#allocation16 + $0x40] sm:$0xff]
    %v801 = vld [vmem:[#allocation16 + $0x48] sm:$0xff]
    %v802 = vld [vmem:[#allocation16 + $0x50] sm:$0xff]
    %v803 = vld [vmem:[#allocation16 + $0x58] sm:$0xff]
    %v804 = vld [vmem:[#allocation16 + $0x60] sm:$0xff]
    %v805 = vld [vmem:[#allocation16 + $0x68] sm:$0xff]
    %v806 = vld [vmem:[#allocation16 + $0x70] sm:$0xff]
    %v807 = vld [vmem:[#allocation16 + $0x78] sm:$0xff]
    %808 = vmatprep.subr.mxu0 0.0
    %809 = vmatpush1.msra.mxu0 %v776
    %810 = vmatprep.subr.mxu0 0.0
    %811 = vmatpush1.msra.mxu0 %v777
    %812 = vmatprep.subr.mxu0 0.0
    %813 = vmatpush1.msra.mxu0 %v778
    %814 = vmatprep.subr.mxu0 0.0
    %815 = vmatpush1.msra.mxu0 %v779
    %816 = vmatprep.subr.mxu0 0.0
    %817 = vmatpush1.msra.mxu0 %v780
    %818 = vmatprep.subr.mxu0 0.0
    %819 = vmatpush1.msra.mxu0 %v781
    %820 = vmatprep.subr.mxu0 0.0
    %821 = vmatpush1.msra.mxu0 %v782
    %822 = vmatprep.subr.mxu0 0.0
    %823 = vmatpush1.msra.mxu0 %v783
    %824 = vmatprep.subr.mxu0 0.0
    %825 = vmatpush1.msra.mxu0 %v784
    %826 = vmatprep.subr.mxu0 0.0
    %827 = vmatpush1.msra.mxu0 %v785
    %828 = vmatprep.subr.mxu0 0.0
    %829 = vmatpush1.msra.mxu0 %v786
    %830 = vmatprep.subr.mxu0 0.0
    %831 = vmatpush1.msra.mxu0 %v787
    %832 = vmatprep.subr.mxu0 0.0
    %833 = vmatpush1.msra.mxu0 %v788
    %834 = vmatprep.subr.mxu0 0.0
    %835 = vmatpush1.msra.mxu0 %v789
    %836 = vmatprep.subr.mxu0 0.0
    %837 = vmatpush1.msra.mxu0 %v790
    %838 = vmatprep.subr.mxu0 0.0
    %839 = vmatpush1.msra.mxu0 %v791
    %840 = vmatprep.subr.mxu0 0.0
    %841 = vmatpush1.msra.mxu0 0.0
    %842 = vmatprep.subr.mxu0 0.0
    %843 = vmatpush1.msra.mxu0 0.0
    %844 = vmatprep.subr.mxu0 0.0
    %845 = vmatpush1.msra.mxu0 0.0
    %846 = vmatprep.subr.mxu0 0.0
    %847 = vmatpush1.msra.mxu0 0.0
    %848 = vmatprep.subr.mxu0 0.0
    %849 = vmatpush1.msra.mxu0 0.0
    %850 = vmatprep.subr.mxu0 0.0
    %851 = vmatpush1.msra.mxu0 0.0
    %852 = vmatprep.subr.mxu0 0.0
    %853 = vmatpush1.msra.mxu0 0.0
    %854 = vmatprep.subr.mxu0 0.0
    %855 = vmatpush1.msra.mxu0 0.0
    %856 = vmatprep.subr.mxu0 0.0
    %857 = vmatpush1.msra.mxu0 0.0
    %858 = vmatprep.subr.mxu0 0.0
    %859 = vmatpush1.msra.mxu0 0.0
    %860 = vmatprep.subr.mxu0 0.0
    %861 = vmatpush1.msra.mxu0 0.0
    %862 = vmatprep.subr.mxu0 0.0
    %863 = vmatpush1.msra.mxu0 0.0
    %864 = vmatprep.subr.mxu0 0.0
    %865 = vmatpush1.msra.mxu0 0.0
    %866 = vmatprep.subr.mxu0 0.0
    %867 = vmatpush1.msra.mxu0 0.0
    %868 = vmatprep.subr.mxu0 0.0
    %869 = vmatpush1.msra.mxu0 0.0
    %870 = vmatprep.subr.mxu0 0.0
    %871 = vmatpush1.msra.mxu0 0.0
    %872 = vmatprep.mubr.f32.mxu0 0.0
    %873 = vmatmul.mubr.f32.gmra.mrb[0].mxu0 %v771
    %v874 = vpop.f32.mrb[0].mxu0
    %v875 = vadd.f32 0.0, %v874
    %v876 = vpop.f32.mrb[0].mxu0
    %877 = vdwg.mxu0
    %878 = vmatprep.subr.mxu0 0.0
    %879 = vmatpush1.msra.mxu0 %v792
    %880 = vmatprep.subr.mxu0 0.0
    %881 = vmatpush1.msra.mxu0 %v793
    %882 = vmatprep.subr.mxu0 0.0
    %883 = vmatpush1.msra.mxu0 %v794
    %884 = vmatprep.subr.mxu0 0.0
    %885 = vmatpush1.msra.mxu0 %v795
    %886 = vmatprep.subr.mxu0 0.0
    %887 = vmatpush1.msra.mxu0 %v796
    %888 = vmatprep.subr.mxu0 0.0
    %889 = vmatpush1.msra.mxu0 %v797
    %890 = vmatprep.subr.mxu0 0.0
    %891 = vmatpush1.msra.mxu0 %v798
    %892 = vmatprep.subr.mxu0 0.0
    %893 = vmatpush1.msra.mxu0 %v799
    %894 = vmatprep.subr.mxu0 0.0
    %895 = vmatpush1.msra.mxu0 %v800
    %896 = vmatprep.subr.mxu0 0.0
    %897 = vmatpush1.msra.mxu0 %v801
    %898 = vmatprep.subr.mxu0 0.0
    %899 = vmatpush1.msra.mxu0 %v802
    %900 = vmatprep.subr.mxu0 0.0
    %901 = vmatpush1.msra.mxu0 %v803
    %902 = vmatprep.subr.mxu0 0.0
    %903 = vmatpush1.msra.mxu0 %v804
    %904 = vmatprep.subr.mxu0 0.0
    %905 = vmatpush1.msra.mxu0 %v805
    %906 = vmatprep.subr.mxu0 0.0
    %907 = vmatpush1.msra.mxu0 %v806
    %908 = vmatprep.subr.mxu0 0.0
    %909 = vmatpush1.msra.mxu0 %v807
    %910 = vmatprep.subr.mxu0 0.0
    %911 = vmatpush1.msra.mxu0 0.0
    %912 = vmatprep.subr.mxu0 0.0
    %913 = vmatpush1.msra.mxu0 0.0
    %914 = vmatprep.subr.mxu0 0.0
    %915 = vmatpush1.msra.mxu0 0.0
    %916 = vmatprep.subr.mxu0 0.0
    %917 = vmatpush1.msra.mxu0 0.0
    %918 = vmatprep.subr.mxu0 0.0
    %919 = vmatpush1.msra.mxu0 0.0
    %920 = vmatprep.subr.mxu0 0.0
    %921 = vmatpush1.msra.mxu0 0.0
    %922 = vmatprep.subr.mxu0 0.0
    %923 = vmatpush1.msra.mxu0 0.0
    %924 = vmatprep.subr.mxu0 0.0
    %925 = vmatpush1.msra.mxu0 0.0
    %926 = vmatprep.subr.mxu0 0.0
    %927 = vmatpush1.msra.mxu0 0.0
    %928 = vmatprep.subr.mxu0 0.0
    %929 = vmatpush1.msra.mxu0 0.0
    %930 = vmatprep.subr.mxu0 0.0
    %931 = vmatpush1.msra.mxu0 0.0
    %932 = vmatprep.subr.mxu0 0.0
    %933 = vmatpush1.msra.mxu0 0.0
    %934 = vmatprep.subr.mxu0 0.0
    %935 = vmatpush1.msra.mxu0 0.0
    %936 = vmatprep.subr.mxu0 0.0
    %937 = vmatpush1.msra.mxu0 0.0
    %938 = vmatprep.subr.mxu0 0.0
    %939 = vmatpush1.msra.mxu0 0.0
    %940 = vmatprep.subr.mxu0 0.0
    %941 = vmatpush1.msra.mxu0 0.0
    %942 = vmatprep.mubr.f32.mxu0 0.0
    %943 = vmatmul.mubr.f32.gmra.mrb[0].mxu0 %v775
    %v944 = vpop.f32.mrb[0].mxu0
    %v945 = vadd.f32 0.0, %v944
    %v946 = vpop.f32.mrb[0].mxu0
    %947 = vdwg.mxu0
    %v948 = vsub.f32 %v875, %v945
    %v949 = vld [vmem:[#allocation17] sm:$0x1]
    %v951 = vlaneseq
    %v952 = vshrl.u32 %v951, 7
    %v953 = vsub.s32 0, %v952
    %v954 = vrot.slane %v949, %v953
    %v956 = vadd.f32 %v948, %v954
    %957 = vmatprep.subr.mxu0 0.0
    %958 = vmatpush1.msra.mxu0 %v792
    %959 = vmatprep.subr.mxu0 0.0
    %960 = vmatpush1.msra.mxu0 %v793
    %961 = vmatprep.subr.mxu0 0.0
    %962 = vmatpush1.msra.mxu0 %v794
    %963 = vmatprep.subr.mxu0 0.0
    %964 = vmatpush1.msra.mxu0 %v795
    %965 = vmatprep.subr.mxu0 0.0
    %966 = vmatpush1.msra.mxu0 %v796
    %967 = vmatprep.subr.mxu0 0.0
    %968 = vmatpush1.msra.mxu0 %v797
    %969 = vmatprep.subr.mxu0 0.0
    %970 = vmatpush1.msra.mxu0 %v798
    %971 = vmatprep.subr.mxu0 0.0
    %972 = vmatpush1.msra.mxu0 %v799
    %973 = vmatprep.subr.mxu0 0.0
    %974 = vmatpush1.msra.mxu0 %v800
    %975 = vmatprep.subr.mxu0 0.0
    %976 = vmatpush1.msra.mxu0 %v801
    %977 = vmatprep.subr.mxu0 0.0
    %978 = vmatpush1.msra.mxu0 %v802
    %979 = vmatprep.subr.mxu0 0.0
    %980 = vmatpush1.msra.mxu0 %v803
    %981 = vmatprep.subr.mxu0 0.0
    %982 = vmatpush1.msra.mxu0 %v804
    %983 = vmatprep.subr.mxu0 0.0
    %984 = vmatpush1.msra.mxu0 %v805
    %985 = vmatprep.subr.mxu0 0.0
    %986 = vmatpush1.msra.mxu0 %v806
    %987 = vmatprep.subr.mxu0 0.0
    %988 = vmatpush1.msra.mxu0 %v807
    %989 = vmatprep.subr.mxu0 0.0
    %990 = vmatpush1.msra.mxu0 0.0
    %991 = vmatprep.subr.mxu0 0.0
    %992 = vmatpush1.msra.mxu0 0.0
    %993 = vmatprep.subr.mxu0 0.0
    %994 = vmatpush1.msra.mxu0 0.0
    %995 = vmatprep.subr.mxu0 0.0
    %996 = vmatpush1.msra.mxu0 0.0
    %997 = vmatprep.subr.mxu0 0.0
    %998 = vmatpush1.msra.mxu0 0.0
    %999 = vmatprep.subr.mxu0 0.0
    %1000 = vmatpush1.msra.mxu0 0.0
    %1001 = vmatprep.subr.mxu0 0.0
    %1002 = vmatpush1.msra.mxu0 0.0
    %1003 = vmatprep.subr.mxu0 0.0
    %1004 = vmatpush1.msra.mxu0 0.0
    %1005 = vmatprep.subr.mxu0 0.0
    %1006 = vmatpush1.msra.mxu0 0.0
    %1007 = vmatprep.subr.mxu0 0.0
    %1008 = vmatpush1.msra.mxu0 0.0
    %1009 = vmatprep.subr.mxu0 0.0
    %1010 = vmatpush1.msra.mxu0 0.0
    %1011 = vmatprep.subr.mxu0 0.0
    %1012 = vmatpush1.msra.mxu0 0.0
    %1013 = vmatprep.subr.mxu0 0.0
    %1014 = vmatpush1.msra.mxu0 0.0
    %1015 = vmatprep.subr.mxu0 0.0
    %1016 = vmatpush1.msra.mxu0 0.0
    %1017 = vmatprep.subr.mxu0 0.0
    %1018 = vmatpush1.msra.mxu0 0.0
    %1019 = vmatprep.subr.mxu0 0.0
    %1020 = vmatpush1.msra.mxu0 0.0
    %1021 = vmatprep.mubr.f32.mxu0 0.0
    %1022 = vmatmul.mubr.f32.gmra.mrb[0].mxu0 %v771
    %v1023 = vpop.f32.mrb[0].mxu0
    %v1024 = vadd.f32 0.0, %v1023
    %v1025 = vpop.f32.mrb[0].mxu0
    %1026 = vdwg.mxu0
    %1027 = vmatprep.subr.mxu0 0.0
    %1028 = vmatpush1.msra.mxu0 %v776
    %1029 = vmatprep.subr.mxu0 0.0
    %1030 = vmatpush1.msra.mxu0 %v777
    %1031 = vmatprep.subr.mxu0 0.0
    %1032 = vmatpush1.msra.mxu0 %v778
    %1033 = vmatprep.subr.mxu0 0.0
    %1034 = vmatpush1.msra.mxu0 %v779
    %1035 = vmatprep.subr.mxu0 0.0
    %1036 = vmatpush1.msra.mxu0 %v780
    %1037 = vmatprep.subr.mxu0 0.0
    %1038 = vmatpush1.msra.mxu0 %v781
    %1039 = vmatprep.subr.mxu0 0.0
    %1040 = vmatpush1.msra.mxu0 %v782
    %1041 = vmatprep.subr.mxu0 0.0
    %1042 = vmatpush1.msra.mxu0 %v783
    %1043 = vmatprep.subr.mxu0 0.0
    %1044 = vmatpush1.msra.mxu0 %v784
    %1045 = vmatprep.subr.mxu0 0.0
    %1046 = vmatpush1.msra.mxu0 %v785
    %1047 = vmatprep.subr.mxu0 0.0
    %1048 = vmatpush1.msra.mxu0 %v786
    %1049 = vmatprep.subr.mxu0 0.0
    %1050 = vmatpush1.msra.mxu0 %v787
    %1051 = vmatprep.subr.mxu0 0.0
    %1052 = vmatpush1.msra.mxu0 %v788
    %1053 = vmatprep.subr.mxu0 0.0
    %1054 = vmatpush1.msra.mxu0 %v789
    %1055 = vmatprep.subr.mxu0 0.0
    %1056 = vmatpush1.msra.mxu0 %v790
    %1057 = vmatprep.subr.mxu0 0.0
    %1058 = vmatpush1.msra.mxu0 %v791
    %1059 = vmatprep.subr.mxu0 0.0
    %1060 = vmatpush1.msra.mxu0 0.0
    %1061 = vmatprep.subr.mxu0 0.0
    %1062 = vmatpush1.msra.mxu0 0.0
    %1063 = vmatprep.subr.mxu0 0.0
    %1064 = vmatpush1.msra.mxu0 0.0
    %1065 = vmatprep.subr.mxu0 0.0
    %1066 = vmatpush1.msra.mxu0 0.0
    %1067 = vmatprep.subr.mxu0 0.0
    %1068 = vmatpush1.msra.mxu0 0.0
    %1069 = vmatprep.subr.mxu0 0.0
    %1070 = vmatpush1.msra.mxu0 0.0
    %1071 = vmatprep.subr.mxu0 0.0
    %1072 = vmatpush1.msra.mxu0 0.0
    %1073 = vmatprep.subr.mxu0 0.0
    %1074 = vmatpush1.msra.mxu0 0.0
    %1075 = vmatprep.subr.mxu0 0.0
    %1076 = vmatpush1.msra.mxu0 0.0
    %1077 = vmatprep.subr.mxu0 0.0
    %1078 = vmatpush1.msra.mxu0 0.0
    %1079 = vmatprep.subr.mxu0 0.0
    %1080 = vmatpush1.msra.mxu0 0.0
    %1081 = vmatprep.subr.mxu0 0.0
    %1082 = vmatpush1.msra.mxu0 0.0
    %1083 = vmatprep.subr.mxu0 0.0
    %1084 = vmatpush1.msra.mxu0 0.0
    %1085 = vmatprep.subr.mxu0 0.0
    %1086 = vmatpush1.msra.mxu0 0.0
    %1087 = vmatprep.subr.mxu0 0.0
    %1088 = vmatpush1.msra.mxu0 0.0
    %1089 = vmatprep.subr.mxu0 0.0
    %1090 = vmatpush1.msra.mxu0 0.0
    %1091 = vmatprep.mubr.f32.mxu0 0.0
    %1092 = vmatmul.mubr.f32.gmra.mrb[0].mxu0 %v775
    %v1093 = vpop.f32.mrb[0].mxu0
    %v1094 = vadd.f32 %v1024, %v1093
    %v1095 = vpop.f32.mrb[0].mxu0
    %1096 = vdwg.mxu0
    %v1097 = vld [vmem:[#allocation19] sm:$0x1]
    %v1099 = vlaneseq
    %v1100 = vshrl.u32 %v1099, 7
    %v1101 = vsub.s32 0, %v1100
    %v1102 = vrot.slane %v1097, %v1101
    %v1104 = vadd.f32 %v1094, %v1102
    %v1105 = vld [vmem:[#allocation22] sm:$0x1]
    %v1107 = vlaneseq
    %v1108 = vshrl.u32 %v1107, 7
    %v1109 = vsub.s32 0, %v1108
    %v1110 = vrot.slane %v1105, %v1109
    %v1112 = vmul.f32 %v1110, %v956
    %v1113 = vld [vmem:[#allocation20] sm:$0x1]
    %v1115 = vlaneseq
    %v1116 = vshrl.u32 %v1115, 7
    %v1117 = vsub.s32 0, %v1116
    %v1118 = vrot.slane %v1113, %v1117
    %v1120 = vmul.f32 %v1118, %v1104
    %v1121 = vsub.f32 %v1112, %v1120
    %v1122 = vmul.f32 %v956, %v956
    %v1123 = vmul.f32 %v1104, %v1104
    %v1124 = vadd.f32 %v1122, %v1123
    %v1125 = vmax.f32 %v1124, 1e-30
    %v1126 = vmul.f32 %v1121, %v1121
    %v1127 = vrcp.pop %v1125
    %v1128 = vmul.f32 %v1126, %v1127
    %1129 = vst [vmem:[#allocation23] sm:$0xff] %v1128
    // Predicated region
    $region106: #{tpu_custom_call.1} parent=1 // pred_check
      _
    $region107: #{tpu_custom_call.1} parent=1 // pred_check_branch
      %1131 = sbr.rel (0) target = $region109
    $region108: #{tpu_custom_call.1} parent=1 // pred_region
      %s1133 = ssub.s32 128, 128
      %1134 = vsyncadd [#allocation4], %s1133
      %s1136 = sshll.u32 [#allocation23], 4
      %s1137 = int_to_ptr.vmem [resolvable:$true] %s1136
      %1139 = dma.vmem_to_hbm [thread:$0]  %s1137, 128, %s13, [#allocation4]
    $region109: #{tpu_custom_call.1} parent=1 // pred_fallthru
      _
    // Predicated region
    $region110: #{tpu_custom_call.1} parent=1 // pred_check
      _
    $region111: #{tpu_custom_call.1} parent=1 // pred_check_branch
      %1141 = sbr.rel (0) target = $region113
    $region112: #{tpu_custom_call.1} parent=1 // pred_region
      %1142 = dma.done [#allocation4], 128
    $region113: #{tpu_custom_call.1} parent=1 // pred_fallthru
      _
    %1143 = vsyncpa [#allocation3], 1
    %1144 = vsyncpa [#allocation6], 1
    %1145 = vsyncpa [#allocation9], 1
    %1146 = vsyncpa [#allocation12], 1
    %1147 = vsyncpa [#allocation15], 1
    %1148 = vsyncpa [#allocation18], 1
    %1149 = vsyncpa [#allocation21], 1
    %1150 = vsyncpa [#allocation4], 1

</llo_original>
